<compile_context>
chip_gen: v7x
topology: tpu7x:2x2x1
jax: 0.10.0
libtpu: 0.0.40
codegen_flags: <defaults>
</compile_context>

<pallas_src>
import functools

import numpy as np

import jax
import jax.numpy as jnp
from jax.experimental import pallas as pl
from jax.experimental.pallas import tpu as pltpu

KSIZE = 7
PAD = KSIZE // 2


def _se_kernel(x_ref, w1_ref, w2_ref, wrow_ref, out_ref, *, shifts):
    # x_ref   : (bb, C, H*W)          VMEM (lane-dense batch block)
    # w1_ref  : (1, C, MID)           VMEM (Linear1 weight transposed)
    # w2_ref  : (1, C, MID)           VMEM (Linear2 weight as (C, MID))
    # wrow_ref: (49, 2*H*W)           VMEM (per-tap weight rows, mask folded in)
    # out_ref : (bb, C, H*W)          VMEM
    bb, C, HW = x_ref.shape
    L = 2 * HW

    xf = x_ref[...].astype(jnp.float32)
    # TODO(synk): for large feature maps avoid materializing the full fp32
    # duplicate of a bf16 slab (tile over H*W and accumulate in f32).

    # ---------------- channel attention ----------------
    avg = jnp.mean(xf, axis=2, keepdims=True)                     # (bb, C, 1)
    mx = jnp.max(xf, axis=2, keepdims=True)                       # (bb, C, 1)
    s = avg + mx                                                  # (bb, C, 1)

    # TODO(synk): at production C (>=128) express these as MXU matmuls
    # (jnp.dot with preferred_element_type=f32) instead of broadcast+reduce.
    hidden = jnp.maximum(
        jnp.sum(s * w1_ref[...], axis=1, keepdims=True), 0.0)     # (bb, 1, MID)
    cw = jax.nn.sigmoid(
        jnp.sum(hidden * w2_ref[...], axis=2, keepdims=True))     # (bb, C, 1)

    out = xf * cw                                                 # (bb, C, HW)

    # ---------------- spatial attention ----------------
    avg_sp = jnp.mean(out, axis=1)                                # (bb, HW)
    max_sp = jnp.max(out, axis=1)                                 # (bb, HW)
    comb = jnp.concatenate([avg_sp, max_sp], axis=1)              # (bb, 2*HW)

    # 7x7 conv (2 -> 1 channels, zero padding 3) as 49 lane-rolls of the fused
    # [avg | max] map.  Each tap's weight row already contains the in-bounds
    # mask, so wrap-around lanes contribute exactly zero (matches zero pad).
    accs = [jnp.zeros((bb, L), jnp.float32) for _ in range(4)]
    for k, sft in enumerate(shifts):
        if sft == 0:
            shifted = comb
        else:
            shifted = pltpu.roll(comb, shift=(-sft) % L, axis=1)
        accs[k % 4] = accs[k % 4] + wrow_ref[k:k + 1, :] * shifted
    acc = (accs[0] + accs[1]) + (accs[2] + accs[3])               # (bb, 2*HW)

    sw = jax.nn.sigmoid(acc[:, :HW] + acc[:, HW:])                # (bb, HW)

    out_ref[...] = (out * sw[:, None, :]).astype(out_ref.dtype)


def improved_se_block(x, w1, w2, w_spatial, *, batch_block=None):
    """x: (B, C, H, W); w1: (MID, C); w2: (C, MID); w_spatial: (1, 2, 7, 7)."""
    B, C, H, W = x.shape
    MID = w1.shape[0]
    HW = H * W
    bb = B if batch_block is None else min(batch_block, B)
    assert B % bb == 0, "batch block must divide batch"

    # Lane-dense views / reshaped weights (all cheap wrapper-side reshapes).
    x2 = x.reshape(B, C, HW)
    w1b = jnp.transpose(w1).reshape(1, C, MID).astype(jnp.float32)   # (1,C,MID)
    w2b = w2.reshape(1, C, MID).astype(jnp.float32)                  # (1,C,MID)

    # Precompute, per 7x7 tap: the flat lane shift and a lane-dense weight row
    # (avg half | max half) with the 2-D zero-padding validity mask folded in.
    yy, xx = np.meshgrid(np.arange(H), np.arange(W), indexing="ij")
    yflat = yy.reshape(-1)
    xflat = xx.reshape(-1)
    valid_rows = []
    shifts = []
    for dy in range(KSIZE):
        for dx in range(KSIZE):
            oy, ox = dy - PAD, dx - PAD
            valid = ((yflat + oy >= 0) & (yflat + oy < H) &
                     (xflat + ox >= 0) & (xflat + ox < W)).astype(np.float32)
            valid_rows.append(valid)
            shifts.append(oy * W + ox)
    valid_j = jnp.asarray(np.stack(valid_rows, axis=0))              # (49, HW)
    w_avg = w_spatial[0, 0].reshape(KSIZE * KSIZE, 1).astype(jnp.float32)
    w_max = w_spatial[0, 1].reshape(KSIZE * KSIZE, 1).astype(jnp.float32)
    wrow = jnp.concatenate([w_avg * valid_j, w_max * valid_j], axis=1)  # (49, 2*HW)

    kernel = functools.partial(_se_kernel, shifts=tuple(shifts))

    out2 = pl.pallas_call(
        kernel,
        out_shape=jax.ShapeDtypeStruct((B, C, HW), x.dtype),
        grid=(B // bb,),
        in_specs=[
            pl.BlockSpec((bb, C, HW), lambda i: (i, 0, 0)),
            pl.BlockSpec((1, C, MID), lambda i: (0, 0, 0)),
            pl.BlockSpec((1, C, MID), lambda i: (0, 0, 0)),
            pl.BlockSpec((KSIZE * KSIZE, 2 * HW), lambda i: (0, 0)),
        ],
        out_specs=pl.BlockSpec((bb, C, HW), lambda i: (i, 0, 0)),
        compiler_params=pltpu.CompilerParams(
            dimension_semantics=("parallel",)),
    )(x2, w1b, w2b, wrow)
    return out2.reshape(B, C, H, W)


def ref_forward(x, w1, w2, w_spatial):
    """Pure-JAX reference mirroring the PyTorch module semantics."""
    avg = jnp.mean(x, axis=(2, 3))
    mx = jnp.max(x, axis=(2, 3))
    s = avg + mx
    hidden = jax.nn.relu(s @ w1.T)
    cw = jax.nn.sigmoid(hidden @ w2.T)                           # (B, C)
    out = x * cw[:, :, None, None]
    avg_sp = jnp.mean(out, axis=1, keepdims=True)
    max_sp = jnp.max(out, axis=1, keepdims=True)
    cat = jnp.concatenate([avg_sp, max_sp], axis=1)              # (B, 2, H, W)
    conv = jax.lax.conv_general_dilated(
        cat, w_spatial, window_strides=(1, 1),
        padding=((PAD, PAD), (PAD, PAD)),
        dimension_numbers=("NCHW", "OIHW", "NCHW"))
    sw = jax.nn.sigmoid(conv)
    return out * sw


if __name__ == "__main__":
    B, C, H, W = 2, 32, 16, 16
    REDUCTION = 16
    MID = C // REDUCTION

    key = jax.random.PRNGKey(0)
    kx, k1, k2, k3 = jax.random.split(key, 4)
    x = jax.random.normal(kx, (B, C, H, W), jnp.float32)
    w1 = jax.random.normal(k1, (MID, C), jnp.float32) * 0.2      # Linear1 weight
    w2 = jax.random.normal(k2, (C, MID), jnp.float32) * 0.2      # Linear2 weight
    w_spatial = jax.random.normal(k3, (1, 2, KSIZE, KSIZE), jnp.float32) * 0.2

    out = improved_se_block(x, w1, w2, w_spatial)
    out = jax.block_until_ready(out)

    ref = ref_forward(x, w1, w2, w_spatial)
    if not jnp.allclose(out, ref, atol=1e-4, rtol=1e-4):
        max_err = float(jnp.max(jnp.abs(out - ref)))
        raise RuntimeError(f"Pallas kernel mismatch vs reference, max_err={max_err}")
    print("KERNEL_OK")
</pallas_src>

<mosaic_0001>
module attributes {stable_mosaic.version = 11 : i64} {
  func.func @_se_kernel(%arg0: i32, %arg1: memref<2x32x256xf32, #tpu.memory_space<vmem>>, %arg2: memref<1x32x2xf32, #tpu.memory_space<vmem>>, %arg3: memref<1x32x2xf32, #tpu.memory_space<vmem>>, %arg4: memref<49x512xf32, #tpu.memory_space<vmem>>, %arg5: memref<2x32x256xf32, #tpu.memory_space<vmem>>) attributes {dimension_semantics = [#tpu.dimension_semantics<parallel>], iteration_bounds = array<i64: 1>, scalar_prefetch = 0 : i64, scratch_operands = 0 : i64, tpu.core_type = #tpu.core_type<tc>, window_params = [{transform_indices = @transform_0, window_bounds = array<i64: 2, 32, 256>}, {pipeline_mode = #tpu.pipeline_mode<synchronous>, transform_indices = @transform_1, window_bounds = array<i64: 1, 32, 2>}, {pipeline_mode = #tpu.pipeline_mode<synchronous>, transform_indices = @transform_2, window_bounds = array<i64: 1, 32, 2>}, {pipeline_mode = #tpu.pipeline_mode<synchronous>, transform_indices = @transform_3, window_bounds = array<i64: 49, 512>}, {transform_indices = @transform_4, window_bounds = array<i64: 2, 32, 256>}]} {
    %c0 = arith.constant 0 : index
    %c0_0 = arith.constant 0 : index
    %c0_1 = arith.constant 0 : index
    %0 = vector.load %arg1[%c0, %c0_0, %c0_1] : memref<2x32x256xf32, #tpu.memory_space<vmem>>, vector<2x32x256xf32>
    %cst = arith.constant dense<0.000000e+00> : vector<2x32xf32>
    %1 = vector.multi_reduction <add>, %0, %cst [2] : vector<2x32x256xf32> to vector<2x32xf32>
    %2 = vector.shape_cast %1 : vector<2x32xf32> to vector<2x32x1xf32>
    %cst_2 = arith.constant 2.560000e+02 : f32
    %3 = vector.broadcast %cst_2 : f32 to vector<2x32x1xf32>
    %4 = arith.divf %2, %3 : vector<2x32x1xf32>
    %cst_3 = arith.constant dense<0xFF800000> : vector<2x32xf32>
    %5 = vector.multi_reduction <maximumf>, %0, %cst_3 [2] : vector<2x32x256xf32> to vector<2x32xf32>
    %6 = vector.shape_cast %5 : vector<2x32xf32> to vector<2x32x1xf32>
    %7 = arith.addf %4, %6 : vector<2x32x1xf32>
    %c0_4 = arith.constant 0 : index
    %c0_5 = arith.constant 0 : index
    %c0_6 = arith.constant 0 : index
    %8 = vector.load %arg2[%c0_4, %c0_5, %c0_6] : memref<1x32x2xf32, #tpu.memory_space<vmem>>, vector<1x32x2xf32>
    %9 = vector.broadcast %7 : vector<2x32x1xf32> to vector<2x32x2xf32>
    %10 = vector.broadcast %8 : vector<1x32x2xf32> to vector<2x32x2xf32>
    %11 = arith.mulf %9, %10 : vector<2x32x2xf32>
    %cst_7 = arith.constant dense<0.000000e+00> : vector<2x2xf32>
    %12 = vector.multi_reduction <add>, %11, %cst_7 [1] : vector<2x32x2xf32> to vector<2x2xf32>
    %13 = vector.shape_cast %12 : vector<2x2xf32> to vector<2x1x2xf32>
    %cst_8 = arith.constant 0.000000e+00 : f32
    %14 = vector.broadcast %cst_8 : f32 to vector<2x1x2xf32>
    %15 = arith.maximumf %13, %14 : vector<2x1x2xf32>
    %c0_9 = arith.constant 0 : index
    %c0_10 = arith.constant 0 : index
    %c0_11 = arith.constant 0 : index
    %16 = vector.load %arg3[%c0_9, %c0_10, %c0_11] : memref<1x32x2xf32, #tpu.memory_space<vmem>>, vector<1x32x2xf32>
    %17 = vector.broadcast %15 : vector<2x1x2xf32> to vector<2x32x2xf32>
    %18 = vector.broadcast %16 : vector<1x32x2xf32> to vector<2x32x2xf32>
    %19 = arith.mulf %17, %18 : vector<2x32x2xf32>
    %cst_12 = arith.constant dense<0.000000e+00> : vector<2x32xf32>
    %20 = vector.multi_reduction <add>, %19, %cst_12 [2] : vector<2x32x2xf32> to vector<2x32xf32>
    %21 = vector.shape_cast %20 : vector<2x32xf32> to vector<2x32x1xf32>
    %22 = arith.negf %21 : vector<2x32x1xf32>
    %23 = math.exp %22 : vector<2x32x1xf32>
    %cst_13 = arith.constant 1.000000e+00 : f32
    %24 = vector.broadcast %cst_13 : f32 to vector<2x32x1xf32>
    %25 = arith.addf %24, %23 : vector<2x32x1xf32>
    %26 = arith.divf %24, %25 : vector<2x32x1xf32>
    %27 = vector.broadcast %26 : vector<2x32x1xf32> to vector<2x32x256xf32>
    %28 = arith.mulf %0, %27 : vector<2x32x256xf32>
    %cst_14 = arith.constant dense<0.000000e+00> : vector<2x256xf32>
    %29 = vector.multi_reduction <add>, %28, %cst_14 [1] : vector<2x32x256xf32> to vector<2x256xf32>
    %cst_15 = arith.constant 3.200000e+01 : f32
    %30 = vector.broadcast %cst_15 : f32 to vector<2x256xf32>
    %31 = arith.divf %29, %30 : vector<2x256xf32>
    %cst_16 = arith.constant dense<0xFF800000> : vector<2x256xf32>
    %32 = vector.multi_reduction <maximumf>, %28, %cst_16 [1] : vector<2x32x256xf32> to vector<2x256xf32>
    %33 = tpu.concatenate %31, %32 in 1 : vector<2x256xf32>, vector<2x256xf32> -> vector<2x512xf32>
    %cst_17 = arith.constant 0.000000e+00 : f32
    %34 = vector.broadcast %cst_17 : f32 to vector<2x512xf32>
    %cst_18 = arith.constant 0.000000e+00 : f32
    %35 = vector.broadcast %cst_18 : f32 to vector<2x512xf32>
    %cst_19 = arith.constant 0.000000e+00 : f32
    %36 = vector.broadcast %cst_19 : f32 to vector<2x512xf32>
    %cst_20 = arith.constant 0.000000e+00 : f32
    %37 = vector.broadcast %cst_20 : f32 to vector<2x512xf32>
    %c51_i32 = arith.constant 51 : i32
    %38 = tpu.dynamic_rotate %33 by %c51_i32 dim 1 : vector<2x512xf32>, i32 -> vector<2x512xf32>
    %c0_21 = arith.constant 0 : index
    %c0_22 = arith.constant 0 : index
    %39 = vector.load %arg4[%c0_21, %c0_22] : memref<49x512xf32, #tpu.memory_space<vmem>>, vector<1x512xf32>
    %40 = vector.broadcast %39 : vector<1x512xf32> to vector<2x512xf32>
    %41 = arith.mulf %40, %38 : vector<2x512xf32>
    %42 = arith.addf %34, %41 : vector<2x512xf32>
    %c50_i32 = arith.constant 50 : i32
    %43 = tpu.dynamic_rotate %33 by %c50_i32 dim 1 : vector<2x512xf32>, i32 -> vector<2x512xf32>
    %c1 = arith.constant 1 : index
    %c0_23 = arith.constant 0 : index
    %44 = vector.load %arg4[%c1, %c0_23] : memref<49x512xf32, #tpu.memory_space<vmem>>, vector<1x512xf32>
    %45 = vector.broadcast %44 : vector<1x512xf32> to vector<2x512xf32>
    %46 = arith.mulf %45, %43 : vector<2x512xf32>
    %47 = arith.addf %35, %46 : vector<2x512xf32>
    %c49_i32 = arith.constant 49 : i32
    %48 = tpu.dynamic_rotate %33 by %c49_i32 dim 1 : vector<2x512xf32>, i32 -> vector<2x512xf32>
    %c2 = arith.constant 2 : index
    %c0_24 = arith.constant 0 : index
    %49 = vector.load %arg4[%c2, %c0_24] : memref<49x512xf32, #tpu.memory_space<vmem>>, vector<1x512xf32>
    %50 = vector.broadcast %49 : vector<1x512xf32> to vector<2x512xf32>
    %51 = arith.mulf %50, %48 : vector<2x512xf32>
    %52 = arith.addf %36, %51 : vector<2x512xf32>
    %c48_i32 = arith.constant 48 : i32
    %53 = tpu.dynamic_rotate %33 by %c48_i32 dim 1 : vector<2x512xf32>, i32 -> vector<2x512xf32>
    %c3 = arith.constant 3 : index
    %c0_25 = arith.constant 0 : index
    %54 = vector.load %arg4[%c3, %c0_25] : memref<49x512xf32, #tpu.memory_space<vmem>>, vector<1x512xf32>
    %55 = vector.broadcast %54 : vector<1x512xf32> to vector<2x512xf32>
    %56 = arith.mulf %55, %53 : vector<2x512xf32>
    %57 = arith.addf %37, %56 : vector<2x512xf32>
    %c47_i32 = arith.constant 47 : i32
    %58 = tpu.dynamic_rotate %33 by %c47_i32 dim 1 : vector<2x512xf32>, i32 -> vector<2x512xf32>
    %c4 = arith.constant 4 : index
    %c0_26 = arith.constant 0 : index
    %59 = vector.load %arg4[%c4, %c0_26] : memref<49x512xf32, #tpu.memory_space<vmem>>, vector<1x512xf32>
    %60 = vector.broadcast %59 : vector<1x512xf32> to vector<2x512xf32>
    %61 = arith.mulf %60, %58 : vector<2x512xf32>
    %62 = arith.addf %42, %61 : vector<2x512xf32>
    %c46_i32 = arith.constant 46 : i32
    %63 = tpu.dynamic_rotate %33 by %c46_i32 dim 1 : vector<2x512xf32>, i32 -> vector<2x512xf32>
    %c5 = arith.constant 5 : index
    %c0_27 = arith.constant 0 : index
    %64 = vector.load %arg4[%c5, %c0_27] : memref<49x512xf32, #tpu.memory_space<vmem>>, vector<1x512xf32>
    %65 = vector.broadcast %64 : vector<1x512xf32> to vector<2x512xf32>
    %66 = arith.mulf %65, %63 : vector<2x512xf32>
    %67 = arith.addf %47, %66 : vector<2x512xf32>
    %c45_i32 = arith.constant 45 : i32
    %68 = tpu.dynamic_rotate %33 by %c45_i32 dim 1 : vector<2x512xf32>, i32 -> vector<2x512xf32>
    %c6 = arith.constant 6 : index
    %c0_28 = arith.constant 0 : index
    %69 = vector.load %arg4[%c6, %c0_28] : memref<49x512xf32, #tpu.memory_space<vmem>>, vector<1x512xf32>
    %70 = vector.broadcast %69 : vector<1x512xf32> to vector<2x512xf32>
    %71 = arith.mulf %70, %68 : vector<2x512xf32>
    %72 = arith.addf %52, %71 : vector<2x512xf32>
    %c35_i32 = arith.constant 35 : i32
    %73 = tpu.dynamic_rotate %33 by %c35_i32 dim 1 : vector<2x512xf32>, i32 -> vector<2x512xf32>
    %c7 = arith.constant 7 : index
    %c0_29 = arith.constant 0 : index
    %74 = vector.load %arg4[%c7, %c0_29] : memref<49x512xf32, #tpu.memory_space<vmem>>, vector<1x512xf32>
    %75 = vector.broadcast %74 : vector<1x512xf32> to vector<2x512xf32>
    %76 = arith.mulf %75, %73 : vector<2x512xf32>
    %77 = arith.addf %57, %76 : vector<2x512xf32>
    %c34_i32 = arith.constant 34 : i32
    %78 = tpu.dynamic_rotate %33 by %c34_i32 dim 1 : vector<2x512xf32>, i32 -> vector<2x512xf32>
    %c8 = arith.constant 8 : index
    %c0_30 = arith.constant 0 : index
    %79 = vector.load %arg4[%c8, %c0_30] : memref<49x512xf32, #tpu.memory_space<vmem>>, vector<1x512xf32>
    %80 = vector.broadcast %79 : vector<1x512xf32> to vector<2x512xf32>
    %81 = arith.mulf %80, %78 : vector<2x512xf32>
    %82 = arith.addf %62, %81 : vector<2x512xf32>
    %c33_i32 = arith.constant 33 : i32
    %83 = tpu.dynamic_rotate %33 by %c33_i32 dim 1 : vector<2x512xf32>, i32 -> vector<2x512xf32>
    %c9 = arith.constant 9 : index
    %c0_31 = arith.constant 0 : index
    %84 = vector.load %arg4[%c9, %c0_31] : memref<49x512xf32, #tpu.memory_space<vmem>>, vector<1x512xf32>
    %85 = vector.broadcast %84 : vector<1x512xf32> to vector<2x512xf32>
    %86 = arith.mulf %85, %83 : vector<2x512xf32>
    %87 = arith.addf %67, %86 : vector<2x512xf32>
    %c32_i32 = arith.constant 32 : i32
    %88 = tpu.dynamic_rotate %33 by %c32_i32 dim 1 : vector<2x512xf32>, i32 -> vector<2x512xf32>
    %c10 = arith.constant 10 : index
    %c0_32 = arith.constant 0 : index
    %89 = vector.load %arg4[%c10, %c0_32] : memref<49x512xf32, #tpu.memory_space<vmem>>, vector<1x512xf32>
    %90 = vector.broadcast %89 : vector<1x512xf32> to vector<2x512xf32>
    %91 = arith.mulf %90, %88 : vector<2x512xf32>
    %92 = arith.addf %72, %91 : vector<2x512xf32>
    %c31_i32 = arith.constant 31 : i32
    %93 = tpu.dynamic_rotate %33 by %c31_i32 dim 1 : vector<2x512xf32>, i32 -> vector<2x512xf32>
    %c11 = arith.constant 11 : index
    %c0_33 = arith.constant 0 : index
    %94 = vector.load %arg4[%c11, %c0_33] : memref<49x512xf32, #tpu.memory_space<vmem>>, vector<1x512xf32>
    %95 = vector.broadcast %94 : vector<1x512xf32> to vector<2x512xf32>
    %96 = arith.mulf %95, %93 : vector<2x512xf32>
    %97 = arith.addf %77, %96 : vector<2x512xf32>
    %c30_i32 = arith.constant 30 : i32
    %98 = tpu.dynamic_rotate %33 by %c30_i32 dim 1 : vector<2x512xf32>, i32 -> vector<2x512xf32>
    %c12 = arith.constant 12 : index
    %c0_34 = arith.constant 0 : index
    %99 = vector.load %arg4[%c12, %c0_34] : memref<49x512xf32, #tpu.memory_space<vmem>>, vector<1x512xf32>
    %100 = vector.broadcast %99 : vector<1x512xf32> to vector<2x512xf32>
    %101 = arith.mulf %100, %98 : vector<2x512xf32>
    %102 = arith.addf %82, %101 : vector<2x512xf32>
    %c29_i32 = arith.constant 29 : i32
    %103 = tpu.dynamic_rotate %33 by %c29_i32 dim 1 : vector<2x512xf32>, i32 -> vector<2x512xf32>
    %c13 = arith.constant 13 : index
    %c0_35 = arith.constant 0 : index
    %104 = vector.load %arg4[%c13, %c0_35] : memref<49x512xf32, #tpu.memory_space<vmem>>, vector<1x512xf32>
    %105 = vector.broadcast %104 : vector<1x512xf32> to vector<2x512xf32>
    %106 = arith.mulf %105, %103 : vector<2x512xf32>
    %107 = arith.addf %87, %106 : vector<2x512xf32>
    %c19_i32 = arith.constant 19 : i32
    %108 = tpu.dynamic_rotate %33 by %c19_i32 dim 1 : vector<2x512xf32>, i32 -> vector<2x512xf32>
    %c14 = arith.constant 14 : index
    %c0_36 = arith.constant 0 : index
    %109 = vector.load %arg4[%c14, %c0_36] : memref<49x512xf32, #tpu.memory_space<vmem>>, vector<1x512xf32>
    %110 = vector.broadcast %109 : vector<1x512xf32> to vector<2x512xf32>
    %111 = arith.mulf %110, %108 : vector<2x512xf32>
    %112 = arith.addf %92, %111 : vector<2x512xf32>
    %c18_i32 = arith.constant 18 : i32
    %113 = tpu.dynamic_rotate %33 by %c18_i32 dim 1 : vector<2x512xf32>, i32 -> vector<2x512xf32>
    %c15 = arith.constant 15 : index
    %c0_37 = arith.constant 0 : index
    %114 = vector.load %arg4[%c15, %c0_37] : memref<49x512xf32, #tpu.memory_space<vmem>>, vector<1x512xf32>
    %115 = vector.broadcast %114 : vector<1x512xf32> to vector<2x512xf32>
    %116 = arith.mulf %115, %113 : vector<2x512xf32>
    %117 = arith.addf %97, %116 : vector<2x512xf32>
    %c17_i32 = arith.constant 17 : i32
    %118 = tpu.dynamic_rotate %33 by %c17_i32 dim 1 : vector<2x512xf32>, i32 -> vector<2x512xf32>
    %c16 = arith.constant 16 : index
    %c0_38 = arith.constant 0 : index
    %119 = vector.load %arg4[%c16, %c0_38] : memref<49x512xf32, #tpu.memory_space<vmem>>, vector<1x512xf32>
    %120 = vector.broadcast %119 : vector<1x512xf32> to vector<2x512xf32>
    %121 = arith.mulf %120, %118 : vector<2x512xf32>
    %122 = arith.addf %102, %121 : vector<2x512xf32>
    %c16_i32 = arith.constant 16 : i32
    %123 = tpu.dynamic_rotate %33 by %c16_i32 dim 1 : vector<2x512xf32>, i32 -> vector<2x512xf32>
    %c17 = arith.constant 17 : index
    %c0_39 = arith.constant 0 : index
    %124 = vector.load %arg4[%c17, %c0_39] : memref<49x512xf32, #tpu.memory_space<vmem>>, vector<1x512xf32>
    %125 = vector.broadcast %124 : vector<1x512xf32> to vector<2x512xf32>
    %126 = arith.mulf %125, %123 : vector<2x512xf32>
    %127 = arith.addf %107, %126 : vector<2x512xf32>
    %c15_i32 = arith.constant 15 : i32
    %128 = tpu.dynamic_rotate %33 by %c15_i32 dim 1 : vector<2x512xf32>, i32 -> vector<2x512xf32>
    %c18 = arith.constant 18 : index
    %c0_40 = arith.constant 0 : index
    %129 = vector.load %arg4[%c18, %c0_40] : memref<49x512xf32, #tpu.memory_space<vmem>>, vector<1x512xf32>
    %130 = vector.broadcast %129 : vector<1x512xf32> to vector<2x512xf32>
    %131 = arith.mulf %130, %128 : vector<2x512xf32>
    %132 = arith.addf %112, %131 : vector<2x512xf32>
    %c14_i32 = arith.constant 14 : i32
    %133 = tpu.dynamic_rotate %33 by %c14_i32 dim 1 : vector<2x512xf32>, i32 -> vector<2x512xf32>
    %c19 = arith.constant 19 : index
    %c0_41 = arith.constant 0 : index
    %134 = vector.load %arg4[%c19, %c0_41] : memref<49x512xf32, #tpu.memory_space<vmem>>, vector<1x512xf32>
    %135 = vector.broadcast %134 : vector<1x512xf32> to vector<2x512xf32>
    %136 = arith.mulf %135, %133 : vector<2x512xf32>
    %137 = arith.addf %117, %136 : vector<2x512xf32>
    %c13_i32 = arith.constant 13 : i32
    %138 = tpu.dynamic_rotate %33 by %c13_i32 dim 1 : vector<2x512xf32>, i32 -> vector<2x512xf32>
    %c20 = arith.constant 20 : index
    %c0_42 = arith.constant 0 : index
    %139 = vector.load %arg4[%c20, %c0_42] : memref<49x512xf32, #tpu.memory_space<vmem>>, vector<1x512xf32>
    %140 = vector.broadcast %139 : vector<1x512xf32> to vector<2x512xf32>
    %141 = arith.mulf %140, %138 : vector<2x512xf32>
    %142 = arith.addf %122, %141 : vector<2x512xf32>
    %c3_i32 = arith.constant 3 : i32
    %143 = tpu.dynamic_rotate %33 by %c3_i32 dim 1 : vector<2x512xf32>, i32 -> vector<2x512xf32>
    %c21 = arith.constant 21 : index
    %c0_43 = arith.constant 0 : index
    %144 = vector.load %arg4[%c21, %c0_43] : memref<49x512xf32, #tpu.memory_space<vmem>>, vector<1x512xf32>
    %145 = vector.broadcast %144 : vector<1x512xf32> to vector<2x512xf32>
    %146 = arith.mulf %145, %143 : vector<2x512xf32>
    %147 = arith.addf %127, %146 : vector<2x512xf32>
    %c2_i32 = arith.constant 2 : i32
    %148 = tpu.dynamic_rotate %33 by %c2_i32 dim 1 : vector<2x512xf32>, i32 -> vector<2x512xf32>
    %c22 = arith.constant 22 : index
    %c0_44 = arith.constant 0 : index
    %149 = vector.load %arg4[%c22, %c0_44] : memref<49x512xf32, #tpu.memory_space<vmem>>, vector<1x512xf32>
    %150 = vector.broadcast %149 : vector<1x512xf32> to vector<2x512xf32>
    %151 = arith.mulf %150, %148 : vector<2x512xf32>
    %152 = arith.addf %132, %151 : vector<2x512xf32>
    %c1_i32 = arith.constant 1 : i32
    %153 = tpu.dynamic_rotate %33 by %c1_i32 dim 1 : vector<2x512xf32>, i32 -> vector<2x512xf32>
    %c23 = arith.constant 23 : index
    %c0_45 = arith.constant 0 : index
    %154 = vector.load %arg4[%c23, %c0_45] : memref<49x512xf32, #tpu.memory_space<vmem>>, vector<1x512xf32>
    %155 = vector.broadcast %154 : vector<1x512xf32> to vector<2x512xf32>
    %156 = arith.mulf %155, %153 : vector<2x512xf32>
    %157 = arith.addf %137, %156 : vector<2x512xf32>
    %c24 = arith.constant 24 : index
    %c0_46 = arith.constant 0 : index
    %158 = vector.load %arg4[%c24, %c0_46] : memref<49x512xf32, #tpu.memory_space<vmem>>, vector<1x512xf32>
    %159 = vector.broadcast %158 : vector<1x512xf32> to vector<2x512xf32>
    %160 = arith.mulf %159, %33 : vector<2x512xf32>
    %161 = arith.addf %142, %160 : vector<2x512xf32>
    %c511_i32 = arith.constant 511 : i32
    %162 = tpu.dynamic_rotate %33 by %c511_i32 dim 1 : vector<2x512xf32>, i32 -> vector<2x512xf32>
    %c25 = arith.constant 25 : index
    %c0_47 = arith.constant 0 : index
    %163 = vector.load %arg4[%c25, %c0_47] : memref<49x512xf32, #tpu.memory_space<vmem>>, vector<1x512xf32>
    %164 = vector.broadcast %163 : vector<1x512xf32> to vector<2x512xf32>
    %165 = arith.mulf %164, %162 : vector<2x512xf32>
    %166 = arith.addf %147, %165 : vector<2x512xf32>
    %c510_i32 = arith.constant 510 : i32
    %167 = tpu.dynamic_rotate %33 by %c510_i32 dim 1 : vector<2x512xf32>, i32 -> vector<2x512xf32>
    %c26 = arith.constant 26 : index
    %c0_48 = arith.constant 0 : index
    %168 = vector.load %arg4[%c26, %c0_48] : memref<49x512xf32, #tpu.memory_space<vmem>>, vector<1x512xf32>
    %169 = vector.broadcast %168 : vector<1x512xf32> to vector<2x512xf32>
    %170 = arith.mulf %169, %167 : vector<2x512xf32>
    %171 = arith.addf %152, %170 : vector<2x512xf32>
    %c509_i32 = arith.constant 509 : i32
    %172 = tpu.dynamic_rotate %33 by %c509_i32 dim 1 : vector<2x512xf32>, i32 -> vector<2x512xf32>
    %c27 = arith.constant 27 : index
    %c0_49 = arith.constant 0 : index
    %173 = vector.load %arg4[%c27, %c0_49] : memref<49x512xf32, #tpu.memory_space<vmem>>, vector<1x512xf32>
    %174 = vector.broadcast %173 : vector<1x512xf32> to vector<2x512xf32>
    %175 = arith.mulf %174, %172 : vector<2x512xf32>
    %176 = arith.addf %157, %175 : vector<2x512xf32>
    %c499_i32 = arith.constant 499 : i32
    %177 = tpu.dynamic_rotate %33 by %c499_i32 dim 1 : vector<2x512xf32>, i32 -> vector<2x512xf32>
    %c28 = arith.constant 28 : index
    %c0_50 = arith.constant 0 : index
    %178 = vector.load %arg4[%c28, %c0_50] : memref<49x512xf32, #tpu.memory_space<vmem>>, vector<1x512xf32>
    %179 = vector.broadcast %178 : vector<1x512xf32> to vector<2x512xf32>
    %180 = arith.mulf %179, %177 : vector<2x512xf32>
    %181 = arith.addf %161, %180 : vector<2x512xf32>
    %c498_i32 = arith.constant 498 : i32
    %182 = tpu.dynamic_rotate %33 by %c498_i32 dim 1 : vector<2x512xf32>, i32 -> vector<2x512xf32>
    %c29 = arith.constant 29 : index
    %c0_51 = arith.constant 0 : index
    %183 = vector.load %arg4[%c29, %c0_51] : memref<49x512xf32, #tpu.memory_space<vmem>>, vector<1x512xf32>
    %184 = vector.broadcast %183 : vector<1x512xf32> to vector<2x512xf32>
    %185 = arith.mulf %184, %182 : vector<2x512xf32>
    %186 = arith.addf %166, %185 : vector<2x512xf32>
    %c497_i32 = arith.constant 497 : i32
    %187 = tpu.dynamic_rotate %33 by %c497_i32 dim 1 : vector<2x512xf32>, i32 -> vector<2x512xf32>
    %c30 = arith.constant 30 : index
    %c0_52 = arith.constant 0 : index
    %188 = vector.load %arg4[%c30, %c0_52] : memref<49x512xf32, #tpu.memory_space<vmem>>, vector<1x512xf32>
    %189 = vector.broadcast %188 : vector<1x512xf32> to vector<2x512xf32>
    %190 = arith.mulf %189, %187 : vector<2x512xf32>
    %191 = arith.addf %171, %190 : vector<2x512xf32>
    %c496_i32 = arith.constant 496 : i32
    %192 = tpu.dynamic_rotate %33 by %c496_i32 dim 1 : vector<2x512xf32>, i32 -> vector<2x512xf32>
    %c31 = arith.constant 31 : index
    %c0_53 = arith.constant 0 : index
    %193 = vector.load %arg4[%c31, %c0_53] : memref<49x512xf32, #tpu.memory_space<vmem>>, vector<1x512xf32>
    %194 = vector.broadcast %193 : vector<1x512xf32> to vector<2x512xf32>
    %195 = arith.mulf %194, %192 : vector<2x512xf32>
    %196 = arith.addf %176, %195 : vector<2x512xf32>
    %c495_i32 = arith.constant 495 : i32
    %197 = tpu.dynamic_rotate %33 by %c495_i32 dim 1 : vector<2x512xf32>, i32 -> vector<2x512xf32>
    %c32 = arith.constant 32 : index
    %c0_54 = arith.constant 0 : index
    %198 = vector.load %arg4[%c32, %c0_54] : memref<49x512xf32, #tpu.memory_space<vmem>>, vector<1x512xf32>
    %199 = vector.broadcast %198 : vector<1x512xf32> to vector<2x512xf32>
    %200 = arith.mulf %199, %197 : vector<2x512xf32>
    %201 = arith.addf %181, %200 : vector<2x512xf32>
    %c494_i32 = arith.constant 494 : i32
    %202 = tpu.dynamic_rotate %33 by %c494_i32 dim 1 : vector<2x512xf32>, i32 -> vector<2x512xf32>
    %c33 = arith.constant 33 : index
    %c0_55 = arith.constant 0 : index
    %203 = vector.load %arg4[%c33, %c0_55] : memref<49x512xf32, #tpu.memory_space<vmem>>, vector<1x512xf32>
    %204 = vector.broadcast %203 : vector<1x512xf32> to vector<2x512xf32>
    %205 = arith.mulf %204, %202 : vector<2x512xf32>
    %206 = arith.addf %186, %205 : vector<2x512xf32>
    %c493_i32 = arith.constant 493 : i32
    %207 = tpu.dynamic_rotate %33 by %c493_i32 dim 1 : vector<2x512xf32>, i32 -> vector<2x512xf32>
    %c34 = arith.constant 34 : index
    %c0_56 = arith.constant 0 : index
    %208 = vector.load %arg4[%c34, %c0_56] : memref<49x512xf32, #tpu.memory_space<vmem>>, vector<1x512xf32>
    %209 = vector.broadcast %208 : vector<1x512xf32> to vector<2x512xf32>
    %210 = arith.mulf %209, %207 : vector<2x512xf32>
    %211 = arith.addf %191, %210 : vector<2x512xf32>
    %c483_i32 = arith.constant 483 : i32
    %212 = tpu.dynamic_rotate %33 by %c483_i32 dim 1 : vector<2x512xf32>, i32 -> vector<2x512xf32>
    %c35 = arith.constant 35 : index
    %c0_57 = arith.constant 0 : index
    %213 = vector.load %arg4[%c35, %c0_57] : memref<49x512xf32, #tpu.memory_space<vmem>>, vector<1x512xf32>
    %214 = vector.broadcast %213 : vector<1x512xf32> to vector<2x512xf32>
    %215 = arith.mulf %214, %212 : vector<2x512xf32>
    %216 = arith.addf %196, %215 : vector<2x512xf32>
    %c482_i32 = arith.constant 482 : i32
    %217 = tpu.dynamic_rotate %33 by %c482_i32 dim 1 : vector<2x512xf32>, i32 -> vector<2x512xf32>
    %c36 = arith.constant 36 : index
    %c0_58 = arith.constant 0 : index
    %218 = vector.load %arg4[%c36, %c0_58] : memref<49x512xf32, #tpu.memory_space<vmem>>, vector<1x512xf32>
    %219 = vector.broadcast %218 : vector<1x512xf32> to vector<2x512xf32>
    %220 = arith.mulf %219, %217 : vector<2x512xf32>
    %221 = arith.addf %201, %220 : vector<2x512xf32>
    %c481_i32 = arith.constant 481 : i32
    %222 = tpu.dynamic_rotate %33 by %c481_i32 dim 1 : vector<2x512xf32>, i32 -> vector<2x512xf32>
    %c37 = arith.constant 37 : index
    %c0_59 = arith.constant 0 : index
    %223 = vector.load %arg4[%c37, %c0_59] : memref<49x512xf32, #tpu.memory_space<vmem>>, vector<1x512xf32>
    %224 = vector.broadcast %223 : vector<1x512xf32> to vector<2x512xf32>
    %225 = arith.mulf %224, %222 : vector<2x512xf32>
    %226 = arith.addf %206, %225 : vector<2x512xf32>
    %c480_i32 = arith.constant 480 : i32
    %227 = tpu.dynamic_rotate %33 by %c480_i32 dim 1 : vector<2x512xf32>, i32 -> vector<2x512xf32>
    %c38 = arith.constant 38 : index
    %c0_60 = arith.constant 0 : index
    %228 = vector.load %arg4[%c38, %c0_60] : memref<49x512xf32, #tpu.memory_space<vmem>>, vector<1x512xf32>
    %229 = vector.broadcast %228 : vector<1x512xf32> to vector<2x512xf32>
    %230 = arith.mulf %229, %227 : vector<2x512xf32>
    %231 = arith.addf %211, %230 : vector<2x512xf32>
    %c479_i32 = arith.constant 479 : i32
    %232 = tpu.dynamic_rotate %33 by %c479_i32 dim 1 : vector<2x512xf32>, i32 -> vector<2x512xf32>
    %c39 = arith.constant 39 : index
    %c0_61 = arith.constant 0 : index
    %233 = vector.load %arg4[%c39, %c0_61] : memref<49x512xf32, #tpu.memory_space<vmem>>, vector<1x512xf32>
    %234 = vector.broadcast %233 : vector<1x512xf32> to vector<2x512xf32>
    %235 = arith.mulf %234, %232 : vector<2x512xf32>
    %236 = arith.addf %216, %235 : vector<2x512xf32>
    %c478_i32 = arith.constant 478 : i32
    %237 = tpu.dynamic_rotate %33 by %c478_i32 dim 1 : vector<2x512xf32>, i32 -> vector<2x512xf32>
    %c40 = arith.constant 40 : index
    %c0_62 = arith.constant 0 : index
    %238 = vector.load %arg4[%c40, %c0_62] : memref<49x512xf32, #tpu.memory_space<vmem>>, vector<1x512xf32>
    %239 = vector.broadcast %238 : vector<1x512xf32> to vector<2x512xf32>
    %240 = arith.mulf %239, %237 : vector<2x512xf32>
    %241 = arith.addf %221, %240 : vector<2x512xf32>
    %c477_i32 = arith.constant 477 : i32
    %242 = tpu.dynamic_rotate %33 by %c477_i32 dim 1 : vector<2x512xf32>, i32 -> vector<2x512xf32>
    %c41 = arith.constant 41 : index
    %c0_63 = arith.constant 0 : index
    %243 = vector.load %arg4[%c41, %c0_63] : memref<49x512xf32, #tpu.memory_space<vmem>>, vector<1x512xf32>
    %244 = vector.broadcast %243 : vector<1x512xf32> to vector<2x512xf32>
    %245 = arith.mulf %244, %242 : vector<2x512xf32>
    %246 = arith.addf %226, %245 : vector<2x512xf32>
    %c467_i32 = arith.constant 467 : i32
    %247 = tpu.dynamic_rotate %33 by %c467_i32 dim 1 : vector<2x512xf32>, i32 -> vector<2x512xf32>
    %c42 = arith.constant 42 : index
    %c0_64 = arith.constant 0 : index
    %248 = vector.load %arg4[%c42, %c0_64] : memref<49x512xf32, #tpu.memory_space<vmem>>, vector<1x512xf32>
    %249 = vector.broadcast %248 : vector<1x512xf32> to vector<2x512xf32>
    %250 = arith.mulf %249, %247 : vector<2x512xf32>
    %251 = arith.addf %231, %250 : vector<2x512xf32>
    %c466_i32 = arith.constant 466 : i32
    %252 = tpu.dynamic_rotate %33 by %c466_i32 dim 1 : vector<2x512xf32>, i32 -> vector<2x512xf32>
    %c43 = arith.constant 43 : index
    %c0_65 = arith.constant 0 : index
    %253 = vector.load %arg4[%c43, %c0_65] : memref<49x512xf32, #tpu.memory_space<vmem>>, vector<1x512xf32>
    %254 = vector.broadcast %253 : vector<1x512xf32> to vector<2x512xf32>
    %255 = arith.mulf %254, %252 : vector<2x512xf32>
    %256 = arith.addf %236, %255 : vector<2x512xf32>
    %c465_i32 = arith.constant 465 : i32
    %257 = tpu.dynamic_rotate %33 by %c465_i32 dim 1 : vector<2x512xf32>, i32 -> vector<2x512xf32>
    %c44 = arith.constant 44 : index
    %c0_66 = arith.constant 0 : index
    %258 = vector.load %arg4[%c44, %c0_66] : memref<49x512xf32, #tpu.memory_space<vmem>>, vector<1x512xf32>
    %259 = vector.broadcast %258 : vector<1x512xf32> to vector<2x512xf32>
    %260 = arith.mulf %259, %257 : vector<2x512xf32>
    %261 = arith.addf %241, %260 : vector<2x512xf32>
    %c464_i32 = arith.constant 464 : i32
    %262 = tpu.dynamic_rotate %33 by %c464_i32 dim 1 : vector<2x512xf32>, i32 -> vector<2x512xf32>
    %c45 = arith.constant 45 : index
    %c0_67 = arith.constant 0 : index
    %263 = vector.load %arg4[%c45, %c0_67] : memref<49x512xf32, #tpu.memory_space<vmem>>, vector<1x512xf32>
    %264 = vector.broadcast %263 : vector<1x512xf32> to vector<2x512xf32>
    %265 = arith.mulf %264, %262 : vector<2x512xf32>
    %266 = arith.addf %246, %265 : vector<2x512xf32>
    %c463_i32 = arith.constant 463 : i32
    %267 = tpu.dynamic_rotate %33 by %c463_i32 dim 1 : vector<2x512xf32>, i32 -> vector<2x512xf32>
    %c46 = arith.constant 46 : index
    %c0_68 = arith.constant 0 : index
    %268 = vector.load %arg4[%c46, %c0_68] : memref<49x512xf32, #tpu.memory_space<vmem>>, vector<1x512xf32>
    %269 = vector.broadcast %268 : vector<1x512xf32> to vector<2x512xf32>
    %270 = arith.mulf %269, %267 : vector<2x512xf32>
    %271 = arith.addf %251, %270 : vector<2x512xf32>
    %c462_i32 = arith.constant 462 : i32
    %272 = tpu.dynamic_rotate %33 by %c462_i32 dim 1 : vector<2x512xf32>, i32 -> vector<2x512xf32>
    %c47 = arith.constant 47 : index
    %c0_69 = arith.constant 0 : index
    %273 = vector.load %arg4[%c47, %c0_69] : memref<49x512xf32, #tpu.memory_space<vmem>>, vector<1x512xf32>
    %274 = vector.broadcast %273 : vector<1x512xf32> to vector<2x512xf32>
    %275 = arith.mulf %274, %272 : vector<2x512xf32>
    %276 = arith.addf %256, %275 : vector<2x512xf32>
    %c461_i32 = arith.constant 461 : i32
    %277 = tpu.dynamic_rotate %33 by %c461_i32 dim 1 : vector<2x512xf32>, i32 -> vector<2x512xf32>
    %c48 = arith.constant 48 : index
    %c0_70 = arith.constant 0 : index
    %278 = vector.load %arg4[%c48, %c0_70] : memref<49x512xf32, #tpu.memory_space<vmem>>, vector<1x512xf32>
    %279 = vector.broadcast %278 : vector<1x512xf32> to vector<2x512xf32>
    %280 = arith.mulf %279, %277 : vector<2x512xf32>
    %281 = arith.addf %261, %280 : vector<2x512xf32>
    %282 = arith.addf %281, %266 : vector<2x512xf32>
    %283 = arith.addf %271, %276 : vector<2x512xf32>
    %284 = arith.addf %282, %283 : vector<2x512xf32>
    %285 = vector.extract_strided_slice %284 {offsets = [0, 0], sizes = [2, 256], strides = [1, 1]} : vector<2x512xf32> to vector<2x256xf32>
    %286 = vector.extract_strided_slice %284 {offsets = [0, 256], sizes = [2, 256], strides = [1, 1]} : vector<2x512xf32> to vector<2x256xf32>
    %287 = arith.addf %285, %286 : vector<2x256xf32>
    %288 = arith.negf %287 : vector<2x256xf32>
    %289 = math.exp %288 : vector<2x256xf32>
    %cst_71 = arith.constant 1.000000e+00 : f32
    %290 = vector.broadcast %cst_71 : f32 to vector<2x256xf32>
    %291 = arith.addf %290, %289 : vector<2x256xf32>
    %292 = arith.divf %290, %291 : vector<2x256xf32>
    %293 = vector.shape_cast %292 : vector<2x256xf32> to vector<2x1x256xf32>
    %294 = vector.broadcast %293 : vector<2x1x256xf32> to vector<2x32x256xf32>
    %295 = arith.mulf %28, %294 : vector<2x32x256xf32>
    %c0_72 = arith.constant 0 : index
    %c0_73 = arith.constant 0 : index
    %c0_74 = arith.constant 0 : index
    %296 = vector.load %arg5[%c0_72, %c0_73, %c0_74] : memref<2x32x256xf32, #tpu.memory_space<vmem>>, vector<2x32x256xf32>
    tpu.vector_store %arg5[%c0_72, %c0_73, %c0_74], %295 {strides = array<i32>} : memref<2x32x256xf32, #tpu.memory_space<vmem>>, vector<2x32x256xf32>,
    return
  }
  func.func @transform_0(%arg0: i32) -> (i32, i32, i32) {
    %c0_i32 = arith.constant 0 : i32
    %c0_i32_0 = arith.constant 0 : i32
    %c0_i32_1 = arith.constant 0 : i32
    return %arg0, %c0_i32, %c0_i32_0 : i32, i32, i32
  }
  func.func @transform_1(%arg0: i32) -> (i32, i32, i32) {
    %c0_i32 = arith.constant 0 : i32
    %c0_i32_0 = arith.constant 0 : i32
    %c0_i32_1 = arith.constant 0 : i32
    %c0_i32_2 = arith.constant 0 : i32
    return %c0_i32, %c0_i32_0, %c0_i32_1 : i32, i32, i32
  }
  func.func @transform_2(%arg0: i32) -> (i32, i32, i32) {
    %c0_i32 = arith.constant 0 : i32
    %c0_i32_0 = arith.constant 0 : i32
    %c0_i32_1 = arith.constant 0 : i32
    %c0_i32_2 = arith.constant 0 : i32
    return %c0_i32, %c0_i32_0, %c0_i32_1 : i32, i32, i32
  }
  func.func @transform_3(%arg0: i32) -> (i32, i32) {
    %c0_i32 = arith.constant 0 : i32
    %c0_i32_0 = arith.constant 0 : i32
    %c0_i32_1 = arith.constant 0 : i32
    return %c0_i32, %c0_i32_0 : i32, i32
  }
  func.func @transform_4(%arg0: i32) -> (i32, i32, i32) {
    %c0_i32 = arith.constant 0 : i32
    %c0_i32_0 = arith.constant 0 : i32
    %c0_i32_1 = arith.constant 0 : i32
    return %arg0, %c0_i32, %c0_i32_0 : i32, i32, i32
  }
}

</mosaic_0001>

<llo_original>
// kernel: tpu_custom_call.1
$region0: #{tpu_custom_call.1}
  #allocation0 [shape = 'u32[]', space=smem, size = 0x4, offset = 0x4, fixed_abs, tag = 'smem constant byte address 0x4 - core index']
  #allocation1 [shape = 'u32[144,128]{1,0:T(1,128)}', space=vmem, size = 0x12000, scoped, tag = 'internal scratch']
  %s0 = inlined_call_operand.hbm [shape: f32[2,32,256], index: 0, kind: input, shape index: {}]
  %s1 = inlined_call_operand.vmem [shape: f32[1,32,2], index: 1, kind: input, shape index: {}]
  %s2 = inlined_call_operand.vmem [shape: f32[1,32,2], index: 2, kind: input, shape index: {}]
  %s3 = inlined_call_operand.hbm [shape: f32[49,512], index: 3, kind: input, shape index: {}]
  %s4 = inlined_call_operand.hbm [shape: f32[2,32,256], index: 4, kind: output, shape index: {}]
  %s5 = sld [smem:[#allocation0]]
  $region34: #{tpu_custom_call.1} parent=0
    _
  %s7 = ssub.s32 1, %s5
  %s8 = scalar_select 0, %s7, %s5
  $region1: #{tpu_custom_call.1} parent=0
    #allocation2 [shape = 'u8[65536]{0}', space=vmem, size = 0x10000, scoped, tag = 'input window, operand 0, single buffered']
    #allocation3 [shape = 's32[1]{0}', space=sflag, size = 0x4, scoped, tag = 'scoped memory for tpu_custom_call.1']
    #allocation4 [shape = 's32[1]{0}', space=sflag, size = 0x4, scoped, tag = 'scoped memory for tpu_custom_call.1']
    #allocation5 [shape = 'u8[114688]{0}', space=vmem, size = 0x1c000, scoped, tag = 'input window, operand 3, single buffered']
    #allocation6 [shape = 's32[1]{0}', space=sflag, size = 0x4, scoped, tag = 'scoped memory for tpu_custom_call.1']
    #allocation7 [shape = 'u8[65536]{0}', space=vmem, size = 0x10000, scoped, tag = 'output window, operand 0, single buffered']
    %9 = vsyncpa [#allocation3], 0
    %10 = vsyncpa [#allocation6], 0
    %11 = vsyncpa [#allocation4], 0
    // Predicated region
    $region2: #{tpu_custom_call.1} parent=1 // pred_check
      _
    $region3: #{tpu_custom_call.1} parent=1 // pred_check_branch
      %13 = sbr.rel (0) target = $region5
    $region4: #{tpu_custom_call.1} parent=1 // pred_region
      %s15 = ssub.s32 2048, 2048
      %16 = vsyncadd [#allocation3], %s15
      %s17 = sshll.u32 [#allocation2], 4
      %s18 = int_to_ptr.vmem [resolvable:$true] %s17
      %23 = dma.hbm_to_vmem [thread:$0]  %s0, 2048, %s18, [#allocation3], 256, 256, 16
    $region5: #{tpu_custom_call.1} parent=1 // pred_fallthru
      _
    // Predicated region
    $region6: #{tpu_custom_call.1} parent=1 // pred_check
      _
    $region7: #{tpu_custom_call.1} parent=1 // pred_check_branch
      %25 = sbr.rel (0) target = $region9
    $region8: #{tpu_custom_call.1} parent=1 // pred_region
      _
    $region9: #{tpu_custom_call.1} parent=1 // pred_fallthru
      _
    // Predicated region
    $region10: #{tpu_custom_call.1} parent=1 // pred_check
      _
    $region11: #{tpu_custom_call.1} parent=1 // pred_check_branch
      %27 = sbr.rel (0) target = $region13
    $region12: #{tpu_custom_call.1} parent=1 // pred_region
      _
    $region13: #{tpu_custom_call.1} parent=1 // pred_fallthru
      _
    // Predicated region
    $region14: #{tpu_custom_call.1} parent=1 // pred_check
      _
    $region15: #{tpu_custom_call.1} parent=1 // pred_check_branch
      %29 = sbr.rel (0) target = $region17
    $region16: #{tpu_custom_call.1} parent=1 // pred_region
      %s31 = ssub.s32 3584, 3584
      %32 = vsyncadd [#allocation6], %s31
      %s33 = sshll.u32 [#allocation5], 4
      %s34 = int_to_ptr.vmem [resolvable:$true] %s33
      %39 = dma.hbm_to_vmem [thread:$0]  %s3, 3584, %s34, [#allocation6], 512, 512, 32
    $region17: #{tpu_custom_call.1} parent=1 // pred_fallthru
      _
    // Predicated region
    $region18: #{tpu_custom_call.1} parent=1 // pred_check
      _
    $region19: #{tpu_custom_call.1} parent=1 // pred_check_branch
      %41 = sbr.rel (0) target = $region21
    $region20: #{tpu_custom_call.1} parent=1 // pred_region
      %42 = dma.done [#allocation3], 2048
    $region21: #{tpu_custom_call.1} parent=1 // pred_fallthru
      _
    // Predicated region
    $region22: #{tpu_custom_call.1} parent=1 // pred_check
      _
    $region23: #{tpu_custom_call.1} parent=1 // pred_check_branch
      %44 = sbr.rel (0) target = $region25
    $region24: #{tpu_custom_call.1} parent=1 // pred_region
      %45 = dma.done [#allocation6], 3584
    $region25: #{tpu_custom_call.1} parent=1 // pred_fallthru
      _
    %v46 = vld [vmem:[#allocation2] sm:$0xff]
    %v47 = vld [vmem:[#allocation2 + $0x8] sm:$0xff]
    %v48 = vld [vmem:[#allocation2 + $0x10] sm:$0xff]
    %v49 = vld [vmem:[#allocation2 + $0x18] sm:$0xff]
    %v50 = vld [vmem:[#allocation2 + $0x20] sm:$0xff]
    %v51 = vld [vmem:[#allocation2 + $0x28] sm:$0xff]
    %v52 = vld [vmem:[#allocation2 + $0x30] sm:$0xff]
    %v53 = vld [vmem:[#allocation2 + $0x38] sm:$0xff]
    %v54 = vld [vmem:[#allocation2 + $0x40] sm:$0xff]
    %v55 = vld [vmem:[#allocation2 + $0x48] sm:$0xff]
    %v56 = vld [vmem:[#allocation2 + $0x50] sm:$0xff]
    %v57 = vld [vmem:[#allocation2 + $0x58] sm:$0xff]
    %v58 = vld [vmem:[#allocation2 + $0x60] sm:$0xff]
    %v59 = vld [vmem:[#allocation2 + $0x68] sm:$0xff]
    %v60 = vld [vmem:[#allocation2 + $0x70] sm:$0xff]
    %v61 = vld [vmem:[#allocation2 + $0x78] sm:$0xff]
    %v62 = vadd.f32 %v46, %v47
    %63 = vadd.xlane.f32.xlu0 %v62
    %v64 = vpop.xlane.xlu0 %63
    %v65 = vadd.f32 %v48, %v49
    %66 = vadd.xlane.f32.xlu0 %v65
    %v67 = vpop.xlane.xlu0 %66
    %v68 = vadd.f32 %v50, %v51
    %69 = vadd.xlane.f32.xlu0 %v68
    %v70 = vpop.xlane.xlu0 %69
    %v71 = vadd.f32 %v52, %v53
    %72 = vadd.xlane.f32.xlu0 %v71
    %v73 = vpop.xlane.xlu0 %72
    %v74 = vadd.f32 %v54, %v55
    %75 = vadd.xlane.f32.xlu0 %v74
    %v76 = vpop.xlane.xlu0 %75
    %v77 = vadd.f32 %v56, %v57
    %78 = vadd.xlane.f32.xlu0 %v77
    %v79 = vpop.xlane.xlu0 %78
    %v80 = vadd.f32 %v58, %v59
    %81 = vadd.xlane.f32.xlu0 %v80
    %v82 = vpop.xlane.xlu0 %81
    %v83 = vadd.f32 %v60, %v61
    %84 = vadd.xlane.f32.xlu0 %v83
    %v85 = vpop.xlane.xlu0 %84
    %v86 = vrcp.pop 256.0
    %v87 = vmul.f32 %v64, %v86
    %v88 = vmul.f32 %v67, %v86
    %v89 = vmul.f32 %v70, %v86
    %v90 = vmul.f32 %v73, %v86
    %v91 = vmul.f32 %v76, %v86
    %v92 = vmul.f32 %v79, %v86
    %v93 = vmul.f32 %v82, %v86
    %v94 = vmul.f32 %v85, %v86
    %v95 = vmax.f32 %v46, %v47
    %96 = vmax.xlane.f32.xlu0 %v95
    %v97 = vpop.xlane.xlu0 %96
    %v98 = vmax.f32 %v48, %v49
    %99 = vmax.xlane.f32.xlu0 %v98
    %v100 = vpop.xlane.xlu0 %99
    %v101 = vmax.f32 %v50, %v51
    %102 = vmax.xlane.f32.xlu0 %v101
    %v103 = vpop.xlane.xlu0 %102
    %v104 = vmax.f32 %v52, %v53
    %105 = vmax.xlane.f32.xlu0 %v104
    %v106 = vpop.xlane.xlu0 %105
    %v107 = vmax.f32 %v54, %v55
    %108 = vmax.xlane.f32.xlu0 %v107
    %v109 = vpop.xlane.xlu0 %108
    %v110 = vmax.f32 %v56, %v57
    %111 = vmax.xlane.f32.xlu0 %v110
    %v112 = vpop.xlane.xlu0 %111
    %v113 = vmax.f32 %v58, %v59
    %114 = vmax.xlane.f32.xlu0 %v113
    %v115 = vpop.xlane.xlu0 %114
    %v116 = vmax.f32 %v60, %v61
    %117 = vmax.xlane.f32.xlu0 %v116
    %v118 = vpop.xlane.xlu0 %117
    %v119 = vadd.f32 %v87, %v97
    %v120 = vadd.f32 %v88, %v100
    %v121 = vadd.f32 %v89, %v103
    %v122 = vadd.f32 %v90, %v106
    %v123 = vadd.f32 %v91, %v109
    %v124 = vadd.f32 %v92, %v112
    %v125 = vadd.f32 %v93, %v115
    %v126 = vadd.f32 %v94, %v118
    %v127 = vld [vmem:[%s1] sm:$0xff]
    %v128 = vld [vmem:[%s1 + $0x8] sm:$0xff]
    %v129 = vld [vmem:[%s1 + $0x10] sm:$0xff]
    %v130 = vld [vmem:[%s1 + $0x18] sm:$0xff]
    %v131 = vmul.f32 %v119, %v127
    %v132 = vmul.f32 %v120, %v128
    %v133 = vmul.f32 %v121, %v129
    %v134 = vmul.f32 %v122, %v130
    %v135 = vmul.f32 %v123, %v127
    %v136 = vmul.f32 %v124, %v128
    %v137 = vmul.f32 %v125, %v129
    %v138 = vmul.f32 %v126, %v130
    %vm139 = vcmask 15360
    %v140 = vsel %vm139, %v131, 0.0
    %v141 = vsel %vm139, %v132, 0.0
    %v142 = vadd.f32 %v140, %v141
    %v143 = vsel %vm139, %v133, 0.0
    %v144 = vadd.f32 %v142, %v143
    %v145 = vsel %vm139, %v134, 0.0
    %v146 = vadd.f32 %v144, %v145
    %v147 = vrot.slane %v146, 4
    %v148 = vadd.f32 %v146, %v147
    %v149 = vrot.slane %v148, 2
    %v150 = vadd.f32 %v148, %v149
    %v151 = vrot.slane %v150, 1
    %v152 = vadd.f32 %v150, %v151
    %v153 = vsel %vm139, %v135, 0.0
    %v154 = vsel %vm139, %v136, 0.0
    %v155 = vadd.f32 %v153, %v154
    %v156 = vsel %vm139, %v137, 0.0
    %v157 = vadd.f32 %v155, %v156
    %v158 = vsel %vm139, %v138, 0.0
    %v159 = vadd.f32 %v157, %v158
    %v160 = vrot.slane %v159, 4
    %v161 = vadd.f32 %v159, %v160
    %v162 = vrot.slane %v161, 2
    %v163 = vadd.f32 %v161, %v162
    %v164 = vrot.slane %v163, 1
    %v165 = vadd.f32 %v163, %v164
    %v166 = vmax.f32 %v152, 0.0
    %v167 = vmax.f32 %v165, 0.0
    %v168 = vld [vmem:[%s2] sm:$0xff]
    %v169 = vld [vmem:[%s2 + $0x8] sm:$0xff]
    %v170 = vld [vmem:[%s2 + $0x10] sm:$0xff]
    %v171 = vld [vmem:[%s2 + $0x18] sm:$0xff]
    %v172 = vmul.f32 %v166, %v168
    %v173 = vmul.f32 %v166, %v169
    %v174 = vmul.f32 %v166, %v170
    %v175 = vmul.f32 %v166, %v171
    %v176 = vmul.f32 %v167, %v168
    %v177 = vmul.f32 %v167, %v169
    %v178 = vmul.f32 %v167, %v170
    %v179 = vmul.f32 %v167, %v171
    %v180 = vsel %vm139, %v172, 0.0
    %181 = vadd.xlane.f32.xlu0 %v180
    %v182 = vpop.xlane.xlu0 %181
    %v183 = vsel %vm139, %v173, 0.0
    %184 = vadd.xlane.f32.xlu0 %v183
    %v185 = vpop.xlane.xlu0 %184
    %v186 = vsel %vm139, %v174, 0.0
    %187 = vadd.xlane.f32.xlu0 %v186
    %v188 = vpop.xlane.xlu0 %187
    %v189 = vsel %vm139, %v175, 0.0
    %190 = vadd.xlane.f32.xlu0 %v189
    %v191 = vpop.xlane.xlu0 %190
    %v192 = vsel %vm139, %v176, 0.0
    %193 = vadd.xlane.f32.xlu0 %v192
    %v194 = vpop.xlane.xlu0 %193
    %v195 = vsel %vm139, %v177, 0.0
    %196 = vadd.xlane.f32.xlu0 %v195
    %v197 = vpop.xlane.xlu0 %196
    %v198 = vsel %vm139, %v178, 0.0
    %199 = vadd.xlane.f32.xlu0 %v198
    %v200 = vpop.xlane.xlu0 %199
    %v201 = vsel %vm139, %v179, 0.0
    %202 = vadd.xlane.f32.xlu0 %v201
    %v203 = vpop.xlane.xlu0 %202
    %v204 = vxor.u32 %v182, 2147483648
    %v205 = vxor.u32 %v185, 2147483648
    %v206 = vxor.u32 %v188, 2147483648
    %v207 = vxor.u32 %v191, 2147483648
    %v208 = vxor.u32 %v194, 2147483648
    %v209 = vxor.u32 %v197, 2147483648
    %v210 = vxor.u32 %v200, 2147483648
    %v211 = vxor.u32 %v203, 2147483648
    %v212 = vmul.f32 %v204, 1.442695
    %v213 = vpow.pop %v212
    %v214 = vmul.f32 %v205, 1.442695
    %v215 = vpow.pop %v214
    %v216 = vmul.f32 %v206, 1.442695
    %v217 = vpow.pop %v216
    %v218 = vmul.f32 %v207, 1.442695
    %v219 = vpow.pop %v218
    %v220 = vmul.f32 %v208, 1.442695
    %v221 = vpow.pop %v220
    %v222 = vmul.f32 %v209, 1.442695
    %v223 = vpow.pop %v222
    %v224 = vmul.f32 %v210, 1.442695
    %v225 = vpow.pop %v224
    %v226 = vmul.f32 %v211, 1.442695
    %v227 = vpow.pop %v226
    %v228 = vadd.f32 %v213, 1.0
    %v229 = vadd.f32 %v215, 1.0
    %v230 = vadd.f32 %v217, 1.0
    %v231 = vadd.f32 %v219, 1.0
    %v232 = vadd.f32 %v221, 1.0
    %v233 = vadd.f32 %v223, 1.0
    %v234 = vadd.f32 %v225, 1.0
    %v235 = vadd.f32 %v227, 1.0
    %v236 = vrcp.pop %v228
    %v237 = vmul.f32 1.0, %v236
    %v238 = vrcp.pop %v229
    %v239 = vmul.f32 1.0, %v238
    %v240 = vrcp.pop %v230
    %v241 = vmul.f32 1.0, %v240
    %v242 = vrcp.pop %v231
    %v243 = vmul.f32 1.0, %v242
    %v244 = vrcp.pop %v232
    %v245 = vmul.f32 1.0, %v244
    %v246 = vrcp.pop %v233
    %v247 = vmul.f32 1.0, %v246
    %v248 = vrcp.pop %v234
    %v249 = vmul.f32 1.0, %v248
    %v250 = vrcp.pop %v235
    %v251 = vmul.f32 1.0, %v250
    %v252 = vmul.f32 %v46, %v237
    %v253 = vmul.f32 %v47, %v237
    %v254 = vmul.f32 %v48, %v239
    %v255 = vmul.f32 %v49, %v239
    %v256 = vmul.f32 %v50, %v241
    %v257 = vmul.f32 %v51, %v241
    %v258 = vmul.f32 %v52, %v243
    %v259 = vmul.f32 %v53, %v243
    %v260 = vmul.f32 %v54, %v245
    %v261 = vmul.f32 %v55, %v245
    %v262 = vmul.f32 %v56, %v247
    %v263 = vmul.f32 %v57, %v247
    %v264 = vmul.f32 %v58, %v249
    %v265 = vmul.f32 %v59, %v249
    %v266 = vmul.f32 %v60, %v251
    %v267 = vmul.f32 %v61, %v251
    %v268 = vadd.f32 %v252, %v254
    %v269 = vadd.f32 %v268, %v256
    %v270 = vadd.f32 %v269, %v258
    %v271 = vrot.slane %v270, 4
    %v272 = vadd.f32 %v270, %v271
    %v273 = vrot.slane %v272, 2
    %v274 = vadd.f32 %v272, %v273
    %v275 = vrot.slane %v274, 1
    %v276 = vadd.f32 %v274, %v275
    %v277 = vadd.f32 %v253, %v255
    %v278 = vadd.f32 %v277, %v257
    %v279 = vadd.f32 %v278, %v259
    %v280 = vrot.slane %v279, 4
    %v281 = vadd.f32 %v279, %v280
    %v282 = vrot.slane %v281, 2
    %v283 = vadd.f32 %v281, %v282
    %v284 = vrot.slane %v283, 1
    %v285 = vadd.f32 %v283, %v284
    %v286 = vadd.f32 %v260, %v262
    %v287 = vadd.f32 %v286, %v264
    %v288 = vadd.f32 %v287, %v266
    %v289 = vrot.slane %v288, 4
    %v290 = vadd.f32 %v288, %v289
    %v291 = vrot.slane %v290, 2
    %v292 = vadd.f32 %v290, %v291
    %v293 = vrot.slane %v292, 1
    %v294 = vadd.f32 %v292, %v293
    %v295 = vadd.f32 %v261, %v263
    %v296 = vadd.f32 %v295, %v265
    %v297 = vadd.f32 %v296, %v267
    %v298 = vrot.slane %v297, 4
    %v299 = vadd.f32 %v297, %v298
    %v300 = vrot.slane %v299, 2
    %v301 = vadd.f32 %v299, %v300
    %v302 = vrot.slane %v301, 1
    %v303 = vadd.f32 %v301, %v302
    %v304 = vrcp.pop 32.0
    %v305 = vmul.f32 %v276, %v304
    %v306 = vmul.f32 %v285, %v304
    %v307 = vmul.f32 %v294, %v304
    %v308 = vmul.f32 %v303, %v304
    %v309 = vmax.f32 %v252, %v254
    %v310 = vmax.f32 %v309, %v256
    %v311 = vmax.f32 %v310, %v258
    %v312 = vrot.slane %v311, 4
    %v313 = vmax.f32 %v311, %v312
    %v314 = vrot.slane %v313, 2
    %v315 = vmax.f32 %v313, %v314
    %v316 = vrot.slane %v315, 1
    %v317 = vmax.f32 %v315, %v316
    %v318 = vmax.f32 %v253, %v255
    %v319 = vmax.f32 %v318, %v257
    %v320 = vmax.f32 %v319, %v259
    %v321 = vrot.slane %v320, 4
    %v322 = vmax.f32 %v320, %v321
    %v323 = vrot.slane %v322, 2
    %v324 = vmax.f32 %v322, %v323
    %v325 = vrot.slane %v324, 1
    %v326 = vmax.f32 %v324, %v325
    %v327 = vmax.f32 %v260, %v262
    %v328 = vmax.f32 %v327, %v264
    %v329 = vmax.f32 %v328, %v266
    %v330 = vrot.slane %v329, 4
    %v331 = vmax.f32 %v329, %v330
    %v332 = vrot.slane %v331, 2
    %v333 = vmax.f32 %v331, %v332
    %v334 = vrot.slane %v333, 1
    %v335 = vmax.f32 %v333, %v334
    %v336 = vmax.f32 %v261, %v263
    %v337 = vmax.f32 %v336, %v265
    %v338 = vmax.f32 %v337, %v267
    %v339 = vrot.slane %v338, 4
    %v340 = vmax.f32 %v338, %v339
    %v341 = vrot.slane %v340, 2
    %v342 = vmax.f32 %v340, %v341
    %v343 = vrot.slane %v342, 1
    %v344 = vmax.f32 %v342, %v343
    %vm349 = vcmask 1041409
    %v350 = vsel %vm349, %v307, %v305
    %v351 = vsel %vm349, %v308, %v306
    %v358 = vsel %vm349, %v335, %v317
    %v359 = vsel %vm349, %v344, %v326
    %362 = vrot.lane.b32.xlu0 %v350, 51
    %v363 = vpop.permute.xlu0 %362
    %364 = vrot.lane.b32.xlu0 %v351, 51
    %v365 = vpop.permute.xlu0 %364
    %366 = vrot.lane.b32.xlu0 %v358, 51
    %v367 = vpop.permute.xlu0 %366
    %368 = vrot.lane.b32.xlu0 %v359, 51
    %v369 = vpop.permute.xlu0 %368
    %v370 = vlaneseq
    %v371 = vand.u32 %v370, 127
    %vm372 = vcmp.lt.s32.totalorder %v371, 51
    %v373 = vsel %vm372, %v367, %v369
    %v374 = vsel %vm372, %v365, %v367
    %v375 = vsel %vm372, %v363, %v365
    %v376 = vsel %vm372, %v369, %v363
    %v377 = vld [vmem:[#allocation5] ss:$8 sm:$0xf]
    %v379 = vlaneseq
    %v380 = vshrl.u32 %v379, 7
    %v381 = vsub.s32 0, %v380
    %v382 = vrot.slane %v377, %v381
    %v383 = vlaneseq
    %v384 = vshrl.u32 %v383, 7
    %v385 = vsub.s32 1, %v384
    %v386 = vrot.slane %v377, %v385
    %v387 = vlaneseq
    %v388 = vshrl.u32 %v387, 7
    %v389 = vsub.s32 2, %v388
    %v390 = vrot.slane %v377, %v389
    %v391 = vlaneseq
    %v392 = vshrl.u32 %v391, 7
    %v393 = vsub.s32 3, %v392
    %v394 = vrot.slane %v377, %v393
    %v399 = vmul.f32 %v382, %v376
    %v400 = vmul.f32 %v386, %v375
    %v401 = vmul.f32 %v390, %v374
    %v402 = vmul.f32 %v394, %v373
    %v403 = vadd.f32 %v399, 0.0
    %v404 = vadd.f32 %v400, 0.0
    %v405 = vadd.f32 %v401, 0.0
    %v406 = vadd.f32 %v402, 0.0
    %407 = vrot.lane.b32.xlu0 %v350, 50
    %v408 = vpop.permute.xlu0 %407
    %409 = vrot.lane.b32.xlu0 %v351, 50
    %v410 = vpop.permute.xlu0 %409
    %411 = vrot.lane.b32.xlu0 %v358, 50
    %v412 = vpop.permute.xlu0 %411
    %413 = vrot.lane.b32.xlu0 %v359, 50
    %v414 = vpop.permute.xlu0 %413
    %vm415 = vcmp.lt.s32.totalorder %v371, 50
    %v416 = vsel %vm415, %v412, %v414
    %v417 = vsel %vm415, %v410, %v412
    %v418 = vsel %vm415, %v408, %v410
    %v419 = vsel %vm415, %v414, %v408
    %s420 = scalar_lea.vmem [#allocation5], 1
    %v421 = vld [vmem:[%s420] ss:$8 sm:$0xf]
    %v423 = vlaneseq
    %v424 = vshrl.u32 %v423, 7
    %v425 = vsub.s32 0, %v424
    %v426 = vrot.slane %v421, %v425
    %v427 = vlaneseq
    %v428 = vshrl.u32 %v427, 7
    %v429 = vsub.s32 1, %v428
    %v430 = vrot.slane %v421, %v429
    %v431 = vlaneseq
    %v432 = vshrl.u32 %v431, 7
    %v433 = vsub.s32 2, %v432
    %v434 = vrot.slane %v421, %v433
    %v435 = vlaneseq
    %v436 = vshrl.u32 %v435, 7
    %v437 = vsub.s32 3, %v436
    %v438 = vrot.slane %v421, %v437
    %v443 = vmul.f32 %v426, %v419
    %v444 = vmul.f32 %v430, %v418
    %v445 = vmul.f32 %v434, %v417
    %v446 = vmul.f32 %v438, %v416
    %v447 = vadd.f32 %v443, 0.0
    %v448 = vadd.f32 %v444, 0.0
    %v449 = vadd.f32 %v445, 0.0
    %v450 = vadd.f32 %v446, 0.0
    %451 = vrot.lane.b32.xlu0 %v350, 49
    %v452 = vpop.permute.xlu0 %451
    %453 = vrot.lane.b32.xlu0 %v351, 49
    %v454 = vpop.permute.xlu0 %453
    %455 = vrot.lane.b32.xlu0 %v358, 49
    %v456 = vpop.permute.xlu0 %455
    %457 = vrot.lane.b32.xlu0 %v359, 49
    %v458 = vpop.permute.xlu0 %457
    %vm459 = vcmp.lt.s32.totalorder %v371, 49
    %v460 = vsel %vm459, %v456, %v458
    %v461 = vsel %vm459, %v454, %v456
    %v462 = vsel %vm459, %v452, %v454
    %v463 = vsel %vm459, %v458, %v452
    %s464 = scalar_lea.vmem [#allocation5], 2
    %v465 = vld [vmem:[%s464] ss:$8 sm:$0xf]
    %v467 = vlaneseq
    %v468 = vshrl.u32 %v467, 7
    %v469 = vsub.s32 0, %v468
    %v470 = vrot.slane %v465, %v469
    %v471 = vlaneseq
    %v472 = vshrl.u32 %v471, 7
    %v473 = vsub.s32 1, %v472
    %v474 = vrot.slane %v465, %v473
    %v475 = vlaneseq
    %v476 = vshrl.u32 %v475, 7
    %v477 = vsub.s32 2, %v476
    %v478 = vrot.slane %v465, %v477
    %v479 = vlaneseq
    %v480 = vshrl.u32 %v479, 7
    %v481 = vsub.s32 3, %v480
    %v482 = vrot.slane %v465, %v481
    %v487 = vmul.f32 %v470, %v463
    %v488 = vmul.f32 %v474, %v462
    %v489 = vmul.f32 %v478, %v461
    %v490 = vmul.f32 %v482, %v460
    %v491 = vadd.f32 %v487, 0.0
    %v492 = vadd.f32 %v488, 0.0
    %v493 = vadd.f32 %v489, 0.0
    %v494 = vadd.f32 %v490, 0.0
    %495 = vrot.lane.b32.xlu0 %v350, 48
    %v496 = vpop.permute.xlu0 %495
    %497 = vrot.lane.b32.xlu0 %v351, 48
    %v498 = vpop.permute.xlu0 %497
    %499 = vrot.lane.b32.xlu0 %v358, 48
    %v500 = vpop.permute.xlu0 %499
    %501 = vrot.lane.b32.xlu0 %v359, 48
    %v502 = vpop.permute.xlu0 %501
    %vm503 = vcmp.lt.s32.totalorder %v371, 48
    %v504 = vsel %vm503, %v500, %v502
    %v505 = vsel %vm503, %v498, %v500
    %v506 = vsel %vm503, %v496, %v498
    %v507 = vsel %vm503, %v502, %v496
    %s508 = scalar_lea.vmem [#allocation5], 3
    %v509 = vld [vmem:[%s508] ss:$8 sm:$0xf]
    %v511 = vlaneseq
    %v512 = vshrl.u32 %v511, 7
    %v513 = vsub.s32 0, %v512
    %v514 = vrot.slane %v509, %v513
    %v515 = vlaneseq
    %v516 = vshrl.u32 %v515, 7
    %v517 = vsub.s32 1, %v516
    %v518 = vrot.slane %v509, %v517
    %v519 = vlaneseq
    %v520 = vshrl.u32 %v519, 7
    %v521 = vsub.s32 2, %v520
    %v522 = vrot.slane %v509, %v521
    %v523 = vlaneseq
    %v524 = vshrl.u32 %v523, 7
    %v525 = vsub.s32 3, %v524
    %v526 = vrot.slane %v509, %v525
    %v531 = vmul.f32 %v514, %v507
    %v532 = vmul.f32 %v518, %v506
    %v533 = vmul.f32 %v522, %v505
    %v534 = vmul.f32 %v526, %v504
    %v535 = vadd.f32 %v531, 0.0
    %v536 = vadd.f32 %v532, 0.0
    %v537 = vadd.f32 %v533, 0.0
    %v538 = vadd.f32 %v534, 0.0
    %539 = vrot.lane.b32.xlu0 %v350, 47
    %v540 = vpop.permute.xlu0 %539
    %541 = vrot.lane.b32.xlu0 %v351, 47
    %v542 = vpop.permute.xlu0 %541
    %543 = vrot.lane.b32.xlu0 %v358, 47
    %v544 = vpop.permute.xlu0 %543
    %545 = vrot.lane.b32.xlu0 %v359, 47
    %v546 = vpop.permute.xlu0 %545
    %vm547 = vcmp.lt.s32.totalorder %v371, 47
    %v548 = vsel %vm547, %v544, %v546
    %v549 = vsel %vm547, %v542, %v544
    %v550 = vsel %vm547, %v540, %v542
    %v551 = vsel %vm547, %v546, %v540
    %s552 = scalar_lea.vmem [#allocation5], 4
    %v553 = vld [vmem:[%s552] ss:$8 sm:$0xf]
    %v555 = vlaneseq
    %v556 = vshrl.u32 %v555, 7
    %v557 = vsub.s32 0, %v556
    %v558 = vrot.slane %v553, %v557
    %v559 = vlaneseq
    %v560 = vshrl.u32 %v559, 7
    %v561 = vsub.s32 1, %v560
    %v562 = vrot.slane %v553, %v561
    %v563 = vlaneseq
    %v564 = vshrl.u32 %v563, 7
    %v565 = vsub.s32 2, %v564
    %v566 = vrot.slane %v553, %v565
    %v567 = vlaneseq
    %v568 = vshrl.u32 %v567, 7
    %v569 = vsub.s32 3, %v568
    %v570 = vrot.slane %v553, %v569
    %v575 = vmul.f32 %v558, %v551
    %v576 = vmul.f32 %v562, %v550
    %v577 = vmul.f32 %v566, %v549
    %v578 = vmul.f32 %v570, %v548
    %v579 = vadd.f32 %v403, %v575
    %v580 = vadd.f32 %v404, %v576
    %v581 = vadd.f32 %v405, %v577
    %v582 = vadd.f32 %v406, %v578
    %583 = vrot.lane.b32.xlu0 %v350, 46
    %v584 = vpop.permute.xlu0 %583
    %585 = vrot.lane.b32.xlu0 %v351, 46
    %v586 = vpop.permute.xlu0 %585
    %587 = vrot.lane.b32.xlu0 %v358, 46
    %v588 = vpop.permute.xlu0 %587
    %589 = vrot.lane.b32.xlu0 %v359, 46
    %v590 = vpop.permute.xlu0 %589
    %vm591 = vcmp.lt.s32.totalorder %v371, 46
    %v592 = vsel %vm591, %v588, %v590
    %v593 = vsel %vm591, %v586, %v588
    %v594 = vsel %vm591, %v584, %v586
    %v595 = vsel %vm591, %v590, %v584
    %s596 = scalar_lea.vmem [#allocation5], 5
    %v597 = vld [vmem:[%s596] ss:$8 sm:$0xf]
    %v599 = vlaneseq
    %v600 = vshrl.u32 %v599, 7
    %v601 = vsub.s32 0, %v600
    %v602 = vrot.slane %v597, %v601
    %v603 = vlaneseq
    %v604 = vshrl.u32 %v603, 7
    %v605 = vsub.s32 1, %v604
    %v606 = vrot.slane %v597, %v605
    %v607 = vlaneseq
    %v608 = vshrl.u32 %v607, 7
    %v609 = vsub.s32 2, %v608
    %v610 = vrot.slane %v597, %v609
    %v611 = vlaneseq
    %v612 = vshrl.u32 %v611, 7
    %v613 = vsub.s32 3, %v612
    %v614 = vrot.slane %v597, %v613
    %v619 = vmul.f32 %v602, %v595
    %v620 = vmul.f32 %v606, %v594
    %v621 = vmul.f32 %v610, %v593
    %v622 = vmul.f32 %v614, %v592
    %v623 = vadd.f32 %v447, %v619
    %v624 = vadd.f32 %v448, %v620
    %v625 = vadd.f32 %v449, %v621
    %v626 = vadd.f32 %v450, %v622
    %627 = vrot.lane.b32.xlu0 %v350, 45
    %v628 = vpop.permute.xlu0 %627
    %629 = vrot.lane.b32.xlu0 %v351, 45
    %v630 = vpop.permute.xlu0 %629
    %631 = vrot.lane.b32.xlu0 %v358, 45
    %v632 = vpop.permute.xlu0 %631
    %633 = vrot.lane.b32.xlu0 %v359, 45
    %v634 = vpop.permute.xlu0 %633
    %vm635 = vcmp.lt.s32.totalorder %v371, 45
    %v636 = vsel %vm635, %v632, %v634
    %v637 = vsel %vm635, %v630, %v632
    %v638 = vsel %vm635, %v628, %v630
    %v639 = vsel %vm635, %v634, %v628
    %s640 = scalar_lea.vmem [#allocation5], 6
    %v641 = vld [vmem:[%s640] ss:$8 sm:$0xf]
    %v643 = vlaneseq
    %v644 = vshrl.u32 %v643, 7
    %v645 = vsub.s32 0, %v644
    %v646 = vrot.slane %v641, %v645
    %v647 = vlaneseq
    %v648 = vshrl.u32 %v647, 7
    %v649 = vsub.s32 1, %v648
    %v650 = vrot.slane %v641, %v649
    %v651 = vlaneseq
    %v652 = vshrl.u32 %v651, 7
    %v653 = vsub.s32 2, %v652
    %v654 = vrot.slane %v641, %v653
    %v655 = vlaneseq
    %v656 = vshrl.u32 %v655, 7
    %v657 = vsub.s32 3, %v656
    %v658 = vrot.slane %v641, %v657
    %v663 = vmul.f32 %v646, %v639
    %v664 = vmul.f32 %v650, %v638
    %v665 = vmul.f32 %v654, %v637
    %v666 = vmul.f32 %v658, %v636
    %v667 = vadd.f32 %v491, %v663
    %v668 = vadd.f32 %v492, %v664
    %v669 = vadd.f32 %v493, %v665
    %v670 = vadd.f32 %v494, %v666
    %671 = vrot.lane.b32.xlu0 %v350, 35
    %v672 = vpop.permute.xlu0 %671
    %673 = vrot.lane.b32.xlu0 %v351, 35
    %v674 = vpop.permute.xlu0 %673
    %675 = vrot.lane.b32.xlu0 %v358, 35
    %v676 = vpop.permute.xlu0 %675
    %677 = vrot.lane.b32.xlu0 %v359, 35
    %v678 = vpop.permute.xlu0 %677
    %vm679 = vcmp.lt.s32.totalorder %v371, 35
    %v680 = vsel %vm679, %v676, %v678
    %v681 = vsel %vm679, %v674, %v676
    %v682 = vsel %vm679, %v672, %v674
    %v683 = vsel %vm679, %v678, %v672
    %s684 = scalar_lea.vmem [#allocation5], 7
    %v685 = vld [vmem:[%s684] ss:$8 sm:$0xf]
    %v687 = vlaneseq
    %v688 = vshrl.u32 %v687, 7
    %v689 = vsub.s32 0, %v688
    %v690 = vrot.slane %v685, %v689
    %v691 = vlaneseq
    %v692 = vshrl.u32 %v691, 7
    %v693 = vsub.s32 1, %v692
    %v694 = vrot.slane %v685, %v693
    %v695 = vlaneseq
    %v696 = vshrl.u32 %v695, 7
    %v697 = vsub.s32 2, %v696
    %v698 = vrot.slane %v685, %v697
    %v699 = vlaneseq
    %v700 = vshrl.u32 %v699, 7
    %v701 = vsub.s32 3, %v700
    %v702 = vrot.slane %v685, %v701
    %v707 = vmul.f32 %v690, %v683
    %v708 = vmul.f32 %v694, %v682
    %v709 = vmul.f32 %v698, %v681
    %v710 = vmul.f32 %v702, %v680
    %v711 = vadd.f32 %v535, %v707
    %v712 = vadd.f32 %v536, %v708
    %v713 = vadd.f32 %v537, %v709
    %v714 = vadd.f32 %v538, %v710
    %715 = vrot.lane.b32.xlu0 %v350, 34
    %v716 = vpop.permute.xlu0 %715
    %717 = vrot.lane.b32.xlu0 %v351, 34
    %v718 = vpop.permute.xlu0 %717
    %719 = vrot.lane.b32.xlu0 %v358, 34
    %v720 = vpop.permute.xlu0 %719
    %721 = vrot.lane.b32.xlu0 %v359, 34
    %v722 = vpop.permute.xlu0 %721
    %vm723 = vcmp.lt.s32.totalorder %v371, 34
    %v724 = vsel %vm723, %v720, %v722
    %v725 = vsel %vm723, %v718, %v720
    %v726 = vsel %vm723, %v716, %v718
    %v727 = vsel %vm723, %v722, %v716
    %s728 = scalar_lea.vmem [#allocation5], 32
    %v729 = vld [vmem:[%s728] ss:$8 sm:$0xf]
    %v731 = vlaneseq
    %v732 = vshrl.u32 %v731, 7
    %v733 = vsub.s32 0, %v732
    %v734 = vrot.slane %v729, %v733
    %v735 = vlaneseq
    %v736 = vshrl.u32 %v735, 7
    %v737 = vsub.s32 1, %v736
    %v738 = vrot.slane %v729, %v737
    %v739 = vlaneseq
    %v740 = vshrl.u32 %v739, 7
    %v741 = vsub.s32 2, %v740
    %v742 = vrot.slane %v729, %v741
    %v743 = vlaneseq
    %v744 = vshrl.u32 %v743, 7
    %v745 = vsub.s32 3, %v744
    %v746 = vrot.slane %v729, %v745
    %v751 = vmul.f32 %v734, %v727
    %v752 = vmul.f32 %v738, %v726
    %v753 = vmul.f32 %v742, %v725
    %v754 = vmul.f32 %v746, %v724
    %v755 = vadd.f32 %v579, %v751
    %v756 = vadd.f32 %v580, %v752
    %v757 = vadd.f32 %v581, %v753
    %v758 = vadd.f32 %v582, %v754
    %759 = vrot.lane.b32.xlu0 %v350, 33
    %v760 = vpop.permute.xlu0 %759
    %761 = vrot.lane.b32.xlu0 %v351, 33
    %v762 = vpop.permute.xlu0 %761
    %763 = vrot.lane.b32.xlu0 %v358, 33
    %v764 = vpop.permute.xlu0 %763
    %765 = vrot.lane.b32.xlu0 %v359, 33
    %v766 = vpop.permute.xlu0 %765
    %vm767 = vcmp.lt.s32.totalorder %v371, 33
    %v768 = vsel %vm767, %v764, %v766
    %v769 = vsel %vm767, %v762, %v764
    %v770 = vsel %vm767, %v760, %v762
    %v771 = vsel %vm767, %v766, %v760
    %s772 = scalar_lea.vmem [#allocation5], 33
    %v773 = vld [vmem:[%s772] ss:$8 sm:$0xf]
    %v775 = vlaneseq
    %v776 = vshrl.u32 %v775, 7
    %v777 = vsub.s32 0, %v776
    %v778 = vrot.slane %v773, %v777
    %v779 = vlaneseq
    %v780 = vshrl.u32 %v779, 7
    %v781 = vsub.s32 1, %v780
    %v782 = vrot.slane %v773, %v781
    %v783 = vlaneseq
    %v784 = vshrl.u32 %v783, 7
    %v785 = vsub.s32 2, %v784
    %v786 = vrot.slane %v773, %v785
    %v787 = vlaneseq
    %v788 = vshrl.u32 %v787, 7
    %v789 = vsub.s32 3, %v788
    %v790 = vrot.slane %v773, %v789
    %v795 = vmul.f32 %v778, %v771
    %v796 = vmul.f32 %v782, %v770
    %v797 = vmul.f32 %v786, %v769
    %v798 = vmul.f32 %v790, %v768
    %v799 = vadd.f32 %v623, %v795
    %v800 = vadd.f32 %v624, %v796
    %v801 = vadd.f32 %v625, %v797
    %v802 = vadd.f32 %v626, %v798
    %803 = vrot.lane.b32.xlu0 %v350, 32
    %v804 = vpop.permute.xlu0 %803
    %805 = vrot.lane.b32.xlu0 %v351, 32
    %v806 = vpop.permute.xlu0 %805
    %807 = vrot.lane.b32.xlu0 %v358, 32
    %v808 = vpop.permute.xlu0 %807
    %809 = vrot.lane.b32.xlu0 %v359, 32
    %v810 = vpop.permute.xlu0 %809
    %vm811 = vcmp.lt.s32.totalorder %v371, 32
    %v812 = vsel %vm811, %v808, %v810
    %v813 = vsel %vm811, %v806, %v808
    %v814 = vsel %vm811, %v804, %v806
    %v815 = vsel %vm811, %v810, %v804
    %s816 = scalar_lea.vmem [#allocation5], 34
    %v817 = vld [vmem:[%s816] ss:$8 sm:$0xf]
    %v819 = vlaneseq
    %v820 = vshrl.u32 %v819, 7
    %v821 = vsub.s32 0, %v820
    %v822 = vrot.slane %v817, %v821
    %v823 = vlaneseq
    %v824 = vshrl.u32 %v823, 7
    %v825 = vsub.s32 1, %v824
    %v826 = vrot.slane %v817, %v825
    %v827 = vlaneseq
    %v828 = vshrl.u32 %v827, 7
    %v829 = vsub.s32 2, %v828
    %v830 = vrot.slane %v817, %v829
    %v831 = vlaneseq
    %v832 = vshrl.u32 %v831, 7
    %v833 = vsub.s32 3, %v832
    %v834 = vrot.slane %v817, %v833
    %v839 = vmul.f32 %v822, %v815
    %v840 = vmul.f32 %v826, %v814
    %v841 = vmul.f32 %v830, %v813
    %v842 = vmul.f32 %v834, %v812
    %v843 = vadd.f32 %v667, %v839
    %v844 = vadd.f32 %v668, %v840
    %v845 = vadd.f32 %v669, %v841
    %v846 = vadd.f32 %v670, %v842
    %847 = vrot.lane.b32.xlu0 %v350, 31
    %v848 = vpop.permute.xlu0 %847
    %849 = vrot.lane.b32.xlu0 %v351, 31
    %v850 = vpop.permute.xlu0 %849
    %851 = vrot.lane.b32.xlu0 %v358, 31
    %v852 = vpop.permute.xlu0 %851
    %853 = vrot.lane.b32.xlu0 %v359, 31
    %v854 = vpop.permute.xlu0 %853
    %vm855 = vcmp.lt.s32.totalorder %v371, 31
    %v856 = vsel %vm855, %v852, %v854
    %v857 = vsel %vm855, %v850, %v852
    %v858 = vsel %vm855, %v848, %v850
    %v859 = vsel %vm855, %v854, %v848
    %s860 = scalar_lea.vmem [#allocation5], 35
    %v861 = vld [vmem:[%s860] ss:$8 sm:$0xf]
    %v863 = vlaneseq
    %v864 = vshrl.u32 %v863, 7
    %v865 = vsub.s32 0, %v864
    %v866 = vrot.slane %v861, %v865
    %v867 = vlaneseq
    %v868 = vshrl.u32 %v867, 7
    %v869 = vsub.s32 1, %v868
    %v870 = vrot.slane %v861, %v869
    %v871 = vlaneseq
    %v872 = vshrl.u32 %v871, 7
    %v873 = vsub.s32 2, %v872
    %v874 = vrot.slane %v861, %v873
    %v875 = vlaneseq
    %v876 = vshrl.u32 %v875, 7
    %v877 = vsub.s32 3, %v876
    %v878 = vrot.slane %v861, %v877
    %v883 = vmul.f32 %v866, %v859
    %v884 = vmul.f32 %v870, %v858
    %v885 = vmul.f32 %v874, %v857
    %v886 = vmul.f32 %v878, %v856
    %v887 = vadd.f32 %v711, %v883
    %v888 = vadd.f32 %v712, %v884
    %v889 = vadd.f32 %v713, %v885
    %v890 = vadd.f32 %v714, %v886
    %891 = vrot.lane.b32.xlu0 %v350, 30
    %v892 = vpop.permute.xlu0 %891
    %893 = vrot.lane.b32.xlu0 %v351, 30
    %v894 = vpop.permute.xlu0 %893
    %895 = vrot.lane.b32.xlu0 %v358, 30
    %v896 = vpop.permute.xlu0 %895
    %897 = vrot.lane.b32.xlu0 %v359, 30
    %v898 = vpop.permute.xlu0 %897
    %vm899 = vcmp.lt.s32.totalorder %v371, 30
    %v900 = vsel %vm899, %v896, %v898
    %v901 = vsel %vm899, %v894, %v896
    %v902 = vsel %vm899, %v892, %v894
    %v903 = vsel %vm899, %v898, %v892
    %s904 = scalar_lea.vmem [#allocation5], 36
    %v905 = vld [vmem:[%s904] ss:$8 sm:$0xf]
    %v907 = vlaneseq
    %v908 = vshrl.u32 %v907, 7
    %v909 = vsub.s32 0, %v908
    %v910 = vrot.slane %v905, %v909
    %v911 = vlaneseq
    %v912 = vshrl.u32 %v911, 7
    %v913 = vsub.s32 1, %v912
    %v914 = vrot.slane %v905, %v913
    %v915 = vlaneseq
    %v916 = vshrl.u32 %v915, 7
    %v917 = vsub.s32 2, %v916
    %v918 = vrot.slane %v905, %v917
    %v919 = vlaneseq
    %v920 = vshrl.u32 %v919, 7
    %v921 = vsub.s32 3, %v920
    %v922 = vrot.slane %v905, %v921
    %v927 = vmul.f32 %v910, %v903
    %v928 = vmul.f32 %v914, %v902
    %v929 = vmul.f32 %v918, %v901
    %v930 = vmul.f32 %v922, %v900
    %v931 = vadd.f32 %v755, %v927
    %v932 = vadd.f32 %v756, %v928
    %v933 = vadd.f32 %v757, %v929
    %v934 = vadd.f32 %v758, %v930
    %935 = vrot.lane.b32.xlu0 %v350, 29
    %v936 = vpop.permute.xlu0 %935
    %937 = vrot.lane.b32.xlu0 %v351, 29
    %v938 = vpop.permute.xlu0 %937
    %939 = vrot.lane.b32.xlu0 %v358, 29
    %v940 = vpop.permute.xlu0 %939
    %941 = vrot.lane.b32.xlu0 %v359, 29
    %v942 = vpop.permute.xlu0 %941
    %vm943 = vcmp.lt.s32.totalorder %v371, 29
    %v944 = vsel %vm943, %v940, %v942
    %v945 = vsel %vm943, %v938, %v940
    %v946 = vsel %vm943, %v936, %v938
    %v947 = vsel %vm943, %v942, %v936
    %s948 = scalar_lea.vmem [#allocation5], 37
    %v949 = vld [vmem:[%s948] ss:$8 sm:$0xf]
    %v951 = vlaneseq
    %v952 = vshrl.u32 %v951, 7
    %v953 = vsub.s32 0, %v952
    %v954 = vrot.slane %v949, %v953
    %v955 = vlaneseq
    %v956 = vshrl.u32 %v955, 7
    %v957 = vsub.s32 1, %v956
    %v958 = vrot.slane %v949, %v957
    %v959 = vlaneseq
    %v960 = vshrl.u32 %v959, 7
    %v961 = vsub.s32 2, %v960
    %v962 = vrot.slane %v949, %v961
    %v963 = vlaneseq
    %v964 = vshrl.u32 %v963, 7
    %v965 = vsub.s32 3, %v964
    %v966 = vrot.slane %v949, %v965
    %v971 = vmul.f32 %v954, %v947
    %v972 = vmul.f32 %v958, %v946
    %v973 = vmul.f32 %v962, %v945
    %v974 = vmul.f32 %v966, %v944
    %v975 = vadd.f32 %v799, %v971
    %v976 = vadd.f32 %v800, %v972
    %v977 = vadd.f32 %v801, %v973
    %v978 = vadd.f32 %v802, %v974
    %979 = vrot.lane.b32.xlu0 %v350, 19
    %v980 = vpop.permute.xlu0 %979
    %981 = vrot.lane.b32.xlu0 %v351, 19
    %v982 = vpop.permute.xlu0 %981
    %983 = vrot.lane.b32.xlu0 %v358, 19
    %v984 = vpop.permute.xlu0 %983
    %985 = vrot.lane.b32.xlu0 %v359, 19
    %v986 = vpop.permute.xlu0 %985
    %vm987 = vcmp.lt.s32.totalorder %v371, 19
    %v988 = vsel %vm987, %v984, %v986
    %v989 = vsel %vm987, %v982, %v984
    %v990 = vsel %vm987, %v980, %v982
    %v991 = vsel %vm987, %v986, %v980
    %s992 = scalar_lea.vmem [#allocation5], 38
    %v993 = vld [vmem:[%s992] ss:$8 sm:$0xf]
    %v995 = vlaneseq
    %v996 = vshrl.u32 %v995, 7
    %v997 = vsub.s32 0, %v996
    %v998 = vrot.slane %v993, %v997
    %v999 = vlaneseq
    %v1000 = vshrl.u32 %v999, 7
    %v1001 = vsub.s32 1, %v1000
    %v1002 = vrot.slane %v993, %v1001
    %v1003 = vlaneseq
    %v1004 = vshrl.u32 %v1003, 7
    %v1005 = vsub.s32 2, %v1004
    %v1006 = vrot.slane %v993, %v1005
    %v1007 = vlaneseq
    %v1008 = vshrl.u32 %v1007, 7
    %v1009 = vsub.s32 3, %v1008
    %v1010 = vrot.slane %v993, %v1009
    %v1015 = vmul.f32 %v998, %v991
    %v1016 = vmul.f32 %v1002, %v990
    %v1017 = vmul.f32 %v1006, %v989
    %v1018 = vmul.f32 %v1010, %v988
    %v1019 = vadd.f32 %v843, %v1015
    %v1020 = vadd.f32 %v844, %v1016
    %v1021 = vadd.f32 %v845, %v1017
    %v1022 = vadd.f32 %v846, %v1018
    %1023 = vrot.lane.b32.xlu0 %v350, 18
    %v1024 = vpop.permute.xlu0 %1023
    %1025 = vrot.lane.b32.xlu0 %v351, 18
    %v1026 = vpop.permute.xlu0 %1025
    %1027 = vrot.lane.b32.xlu0 %v358, 18
    %v1028 = vpop.permute.xlu0 %1027
    %1029 = vrot.lane.b32.xlu0 %v359, 18
    %v1030 = vpop.permute.xlu0 %1029
    %vm1031 = vcmp.lt.s32.totalorder %v371, 18
    %v1032 = vsel %vm1031, %v1028, %v1030
    %v1033 = vsel %vm1031, %v1026, %v1028
    %v1034 = vsel %vm1031, %v1024, %v1026
    %v1035 = vsel %vm1031, %v1030, %v1024
    %s1036 = scalar_lea.vmem [#allocation5], 39
    %v1037 = vld [vmem:[%s1036] ss:$8 sm:$0xf]
    %v1039 = vlaneseq
    %v1040 = vshrl.u32 %v1039, 7
    %v1041 = vsub.s32 0, %v1040
    %v1042 = vrot.slane %v1037, %v1041
    %v1043 = vlaneseq
    %v1044 = vshrl.u32 %v1043, 7
    %v1045 = vsub.s32 1, %v1044
    %v1046 = vrot.slane %v1037, %v1045
    %v1047 = vlaneseq
    %v1048 = vshrl.u32 %v1047, 7
    %v1049 = vsub.s32 2, %v1048
    %v1050 = vrot.slane %v1037, %v1049
    %v1051 = vlaneseq
    %v1052 = vshrl.u32 %v1051, 7
    %v1053 = vsub.s32 3, %v1052
    %v1054 = vrot.slane %v1037, %v1053
    %v1059 = vmul.f32 %v1042, %v1035
    %v1060 = vmul.f32 %v1046, %v1034
    %v1061 = vmul.f32 %v1050, %v1033
    %v1062 = vmul.f32 %v1054, %v1032
    %v1063 = vadd.f32 %v887, %v1059
    %v1064 = vadd.f32 %v888, %v1060
    %v1065 = vadd.f32 %v889, %v1061
    %v1066 = vadd.f32 %v890, %v1062
    %1067 = vrot.lane.b32.xlu0 %v350, 17
    %v1068 = vpop.permute.xlu0 %1067
    %1069 = vrot.lane.b32.xlu0 %v351, 17
    %v1070 = vpop.permute.xlu0 %1069
    %1071 = vrot.lane.b32.xlu0 %v358, 17
    %v1072 = vpop.permute.xlu0 %1071
    %1073 = vrot.lane.b32.xlu0 %v359, 17
    %v1074 = vpop.permute.xlu0 %1073
    %vm1075 = vcmp.lt.s32.totalorder %v371, 17
    %v1076 = vsel %vm1075, %v1072, %v1074
    %v1077 = vsel %vm1075, %v1070, %v1072
    %v1078 = vsel %vm1075, %v1068, %v1070
    %v1079 = vsel %vm1075, %v1074, %v1068
    %s1080 = scalar_lea.vmem [#allocation5], 64
    %v1081 = vld [vmem:[%s1080] ss:$8 sm:$0xf]
    %v1083 = vlaneseq
    %v1084 = vshrl.u32 %v1083, 7
    %v1085 = vsub.s32 0, %v1084
    %v1086 = vrot.slane %v1081, %v1085
    %v1087 = vlaneseq
    %v1088 = vshrl.u32 %v1087, 7
    %v1089 = vsub.s32 1, %v1088
    %v1090 = vrot.slane %v1081, %v1089
    %v1091 = vlaneseq
    %v1092 = vshrl.u32 %v1091, 7
    %v1093 = vsub.s32 2, %v1092
    %v1094 = vrot.slane %v1081, %v1093
    %v1095 = vlaneseq
    %v1096 = vshrl.u32 %v1095, 7
    %v1097 = vsub.s32 3, %v1096
    %v1098 = vrot.slane %v1081, %v1097
    %v1103 = vmul.f32 %v1086, %v1079
    %v1104 = vmul.f32 %v1090, %v1078
    %v1105 = vmul.f32 %v1094, %v1077
    %v1106 = vmul.f32 %v1098, %v1076
    %v1107 = vadd.f32 %v931, %v1103
    %v1108 = vadd.f32 %v932, %v1104
    %v1109 = vadd.f32 %v933, %v1105
    %v1110 = vadd.f32 %v934, %v1106
    %1111 = vrot.lane.b32.xlu0 %v350, 16
    %v1112 = vpop.permute.xlu0 %1111
    %1113 = vrot.lane.b32.xlu0 %v351, 16
    %v1114 = vpop.permute.xlu0 %1113
    %1115 = vrot.lane.b32.xlu0 %v358, 16
    %v1116 = vpop.permute.xlu0 %1115
    %1117 = vrot.lane.b32.xlu0 %v359, 16
    %v1118 = vpop.permute.xlu0 %1117
    %vm1119 = vcmp.lt.s32.totalorder %v371, 16
    %v1120 = vsel %vm1119, %v1116, %v1118
    %v1121 = vsel %vm1119, %v1114, %v1116
    %v1122 = vsel %vm1119, %v1112, %v1114
    %v1123 = vsel %vm1119, %v1118, %v1112
    %s1124 = scalar_lea.vmem [#allocation5], 65
    %v1125 = vld [vmem:[%s1124] ss:$8 sm:$0xf]
    %v1127 = vlaneseq
    %v1128 = vshrl.u32 %v1127, 7
    %v1129 = vsub.s32 0, %v1128
    %v1130 = vrot.slane %v1125, %v1129
    %v1131 = vlaneseq
    %v1132 = vshrl.u32 %v1131, 7
    %v1133 = vsub.s32 1, %v1132
    %v1134 = vrot.slane %v1125, %v1133
    %v1135 = vlaneseq
    %v1136 = vshrl.u32 %v1135, 7
    %v1137 = vsub.s32 2, %v1136
    %v1138 = vrot.slane %v1125, %v1137
    %v1139 = vlaneseq
    %v1140 = vshrl.u32 %v1139, 7
    %v1141 = vsub.s32 3, %v1140
    %v1142 = vrot.slane %v1125, %v1141
    %v1147 = vmul.f32 %v1130, %v1123
    %v1148 = vmul.f32 %v1134, %v1122
    %v1149 = vmul.f32 %v1138, %v1121
    %v1150 = vmul.f32 %v1142, %v1120
    %v1151 = vadd.f32 %v975, %v1147
    %v1152 = vadd.f32 %v976, %v1148
    %v1153 = vadd.f32 %v977, %v1149
    %v1154 = vadd.f32 %v978, %v1150
    %1155 = vrot.lane.b32.xlu0 %v350, 15
    %v1156 = vpop.permute.xlu0 %1155
    %1157 = vrot.lane.b32.xlu0 %v351, 15
    %v1158 = vpop.permute.xlu0 %1157
    %1159 = vrot.lane.b32.xlu0 %v358, 15
    %v1160 = vpop.permute.xlu0 %1159
    %1161 = vrot.lane.b32.xlu0 %v359, 15
    %v1162 = vpop.permute.xlu0 %1161
    %vm1163 = vcmp.lt.s32.totalorder %v371, 15
    %v1164 = vsel %vm1163, %v1160, %v1162
    %v1165 = vsel %vm1163, %v1158, %v1160
    %v1166 = vsel %vm1163, %v1156, %v1158
    %v1167 = vsel %vm1163, %v1162, %v1156
    %s1168 = scalar_lea.vmem [#allocation5], 66
    %v1169 = vld [vmem:[%s1168] ss:$8 sm:$0xf]
    %v1171 = vlaneseq
    %v1172 = vshrl.u32 %v1171, 7
    %v1173 = vsub.s32 0, %v1172
    %v1174 = vrot.slane %v1169, %v1173
    %v1175 = vlaneseq
    %v1176 = vshrl.u32 %v1175, 7
    %v1177 = vsub.s32 1, %v1176
    %v1178 = vrot.slane %v1169, %v1177
    %v1179 = vlaneseq
    %v1180 = vshrl.u32 %v1179, 7
    %v1181 = vsub.s32 2, %v1180
    %v1182 = vrot.slane %v1169, %v1181
    %v1183 = vlaneseq
    %v1184 = vshrl.u32 %v1183, 7
    %v1185 = vsub.s32 3, %v1184
    %v1186 = vrot.slane %v1169, %v1185
    %v1191 = vmul.f32 %v1174, %v1167
    %v1192 = vmul.f32 %v1178, %v1166
    %v1193 = vmul.f32 %v1182, %v1165
    %v1194 = vmul.f32 %v1186, %v1164
    %v1195 = vadd.f32 %v1019, %v1191
    %v1196 = vadd.f32 %v1020, %v1192
    %v1197 = vadd.f32 %v1021, %v1193
    %v1198 = vadd.f32 %v1022, %v1194
    %1199 = vrot.lane.b32.xlu0 %v350, 14
    %v1200 = vpop.permute.xlu0 %1199
    %1201 = vrot.lane.b32.xlu0 %v351, 14
    %v1202 = vpop.permute.xlu0 %1201
    %1203 = vrot.lane.b32.xlu0 %v358, 14
    %v1204 = vpop.permute.xlu0 %1203
    %1205 = vrot.lane.b32.xlu0 %v359, 14
    %v1206 = vpop.permute.xlu0 %1205
    %vm1207 = vcmp.lt.s32.totalorder %v371, 14
    %v1208 = vsel %vm1207, %v1204, %v1206
    %v1209 = vsel %vm1207, %v1202, %v1204
    %v1210 = vsel %vm1207, %v1200, %v1202
    %v1211 = vsel %vm1207, %v1206, %v1200
    %s1212 = scalar_lea.vmem [#allocation5], 67
    %v1213 = vld [vmem:[%s1212] ss:$8 sm:$0xf]
    %v1215 = vlaneseq
    %v1216 = vshrl.u32 %v1215, 7
    %v1217 = vsub.s32 0, %v1216
    %v1218 = vrot.slane %v1213, %v1217
    %v1219 = vlaneseq
    %v1220 = vshrl.u32 %v1219, 7
    %v1221 = vsub.s32 1, %v1220
    %v1222 = vrot.slane %v1213, %v1221
    %v1223 = vlaneseq
    %v1224 = vshrl.u32 %v1223, 7
    %v1225 = vsub.s32 2, %v1224
    %v1226 = vrot.slane %v1213, %v1225
    %v1227 = vlaneseq
    %v1228 = vshrl.u32 %v1227, 7
    %v1229 = vsub.s32 3, %v1228
    %v1230 = vrot.slane %v1213, %v1229
    %v1235 = vmul.f32 %v1218, %v1211
    %v1236 = vmul.f32 %v1222, %v1210
    %v1237 = vmul.f32 %v1226, %v1209
    %v1238 = vmul.f32 %v1230, %v1208
    %v1239 = vadd.f32 %v1063, %v1235
    %v1240 = vadd.f32 %v1064, %v1236
    %v1241 = vadd.f32 %v1065, %v1237
    %v1242 = vadd.f32 %v1066, %v1238
    %1243 = vrot.lane.b32.xlu0 %v350, 13
    %v1244 = vpop.permute.xlu0 %1243
    %1245 = vrot.lane.b32.xlu0 %v351, 13
    %v1246 = vpop.permute.xlu0 %1245
    %1247 = vrot.lane.b32.xlu0 %v358, 13
    %v1248 = vpop.permute.xlu0 %1247
    %1249 = vrot.lane.b32.xlu0 %v359, 13
    %v1250 = vpop.permute.xlu0 %1249
    %vm1251 = vcmp.lt.s32.totalorder %v371, 13
    %v1252 = vsel %vm1251, %v1248, %v1250
    %v1253 = vsel %vm1251, %v1246, %v1248
    %v1254 = vsel %vm1251, %v1244, %v1246
    %v1255 = vsel %vm1251, %v1250, %v1244
    %s1256 = scalar_lea.vmem [#allocation5], 68
    %v1257 = vld [vmem:[%s1256] ss:$8 sm:$0xf]
    %v1259 = vlaneseq
    %v1260 = vshrl.u32 %v1259, 7
    %v1261 = vsub.s32 0, %v1260
    %v1262 = vrot.slane %v1257, %v1261
    %v1263 = vlaneseq
    %v1264 = vshrl.u32 %v1263, 7
    %v1265 = vsub.s32 1, %v1264
    %v1266 = vrot.slane %v1257, %v1265
    %v1267 = vlaneseq
    %v1268 = vshrl.u32 %v1267, 7
    %v1269 = vsub.s32 2, %v1268
    %v1270 = vrot.slane %v1257, %v1269
    %v1271 = vlaneseq
    %v1272 = vshrl.u32 %v1271, 7
    %v1273 = vsub.s32 3, %v1272
    %v1274 = vrot.slane %v1257, %v1273
    %v1279 = vmul.f32 %v1262, %v1255
    %v1280 = vmul.f32 %v1266, %v1254
    %v1281 = vmul.f32 %v1270, %v1253
    %v1282 = vmul.f32 %v1274, %v1252
    %v1283 = vadd.f32 %v1107, %v1279
    %v1284 = vadd.f32 %v1108, %v1280
    %v1285 = vadd.f32 %v1109, %v1281
    %v1286 = vadd.f32 %v1110, %v1282
    %1287 = vrot.lane.b32.xlu0 %v350, 3
    %v1288 = vpop.permute.xlu0 %1287
    %1289 = vrot.lane.b32.xlu0 %v351, 3
    %v1290 = vpop.permute.xlu0 %1289
    %1291 = vrot.lane.b32.xlu0 %v358, 3
    %v1292 = vpop.permute.xlu0 %1291
    %1293 = vrot.lane.b32.xlu0 %v359, 3
    %v1294 = vpop.permute.xlu0 %1293
    %vm1295 = vcmp.lt.s32.totalorder %v371, 3
    %v1296 = vsel %vm1295, %v1292, %v1294
    %v1297 = vsel %vm1295, %v1290, %v1292
    %v1298 = vsel %vm1295, %v1288, %v1290
    %v1299 = vsel %vm1295, %v1294, %v1288
    %s1300 = scalar_lea.vmem [#allocation5], 69
    %v1301 = vld [vmem:[%s1300] ss:$8 sm:$0xf]
    %v1303 = vlaneseq
    %v1304 = vshrl.u32 %v1303, 7
    %v1305 = vsub.s32 0, %v1304
    %v1306 = vrot.slane %v1301, %v1305
    %v1307 = vlaneseq
    %v1308 = vshrl.u32 %v1307, 7
    %v1309 = vsub.s32 1, %v1308
    %v1310 = vrot.slane %v1301, %v1309
    %v1311 = vlaneseq
    %v1312 = vshrl.u32 %v1311, 7
    %v1313 = vsub.s32 2, %v1312
    %v1314 = vrot.slane %v1301, %v1313
    %v1315 = vlaneseq
    %v1316 = vshrl.u32 %v1315, 7
    %v1317 = vsub.s32 3, %v1316
    %v1318 = vrot.slane %v1301, %v1317
    %v1323 = vmul.f32 %v1306, %v1299
    %v1324 = vmul.f32 %v1310, %v1298
    %v1325 = vmul.f32 %v1314, %v1297
    %v1326 = vmul.f32 %v1318, %v1296
    %v1327 = vadd.f32 %v1151, %v1323
    %v1328 = vadd.f32 %v1152, %v1324
    %v1329 = vadd.f32 %v1153, %v1325
    %v1330 = vadd.f32 %v1154, %v1326
    %1331 = vrot.lane.b32.xlu0 %v350, 2
    %v1332 = vpop.permute.xlu0 %1331
    %1333 = vrot.lane.b32.xlu0 %v351, 2
    %v1334 = vpop.permute.xlu0 %1333
    %1335 = vrot.lane.b32.xlu0 %v358, 2
    %v1336 = vpop.permute.xlu0 %1335
    %1337 = vrot.lane.b32.xlu0 %v359, 2
    %v1338 = vpop.permute.xlu0 %1337
    %vm1339 = vcmp.lt.s32.totalorder %v371, 2
    %v1340 = vsel %vm1339, %v1336, %v1338
    %v1341 = vsel %vm1339, %v1334, %v1336
    %v1342 = vsel %vm1339, %v1332, %v1334
    %v1343 = vsel %vm1339, %v1338, %v1332
    %s1344 = scalar_lea.vmem [#allocation5], 70
    %v1345 = vld [vmem:[%s1344] ss:$8 sm:$0xf]
    %v1347 = vlaneseq
    %v1348 = vshrl.u32 %v1347, 7
    %v1349 = vsub.s32 0, %v1348
    %v1350 = vrot.slane %v1345, %v1349
    %v1351 = vlaneseq
    %v1352 = vshrl.u32 %v1351, 7
    %v1353 = vsub.s32 1, %v1352
    %v1354 = vrot.slane %v1345, %v1353
    %v1355 = vlaneseq
    %v1356 = vshrl.u32 %v1355, 7
    %v1357 = vsub.s32 2, %v1356
    %v1358 = vrot.slane %v1345, %v1357
    %v1359 = vlaneseq
    %v1360 = vshrl.u32 %v1359, 7
    %v1361 = vsub.s32 3, %v1360
    %v1362 = vrot.slane %v1345, %v1361
    %v1367 = vmul.f32 %v1350, %v1343
    %v1368 = vmul.f32 %v1354, %v1342
    %v1369 = vmul.f32 %v1358, %v1341
    %v1370 = vmul.f32 %v1362, %v1340
    %v1371 = vadd.f32 %v1195, %v1367
    %v1372 = vadd.f32 %v1196, %v1368
    %v1373 = vadd.f32 %v1197, %v1369
    %v1374 = vadd.f32 %v1198, %v1370
    %1375 = vrot.lane.b32.xlu0 %v350, 1
    %v1376 = vpop.permute.xlu0 %1375
    %1377 = vrot.lane.b32.xlu0 %v351, 1
    %v1378 = vpop.permute.xlu0 %1377
    %1379 = vrot.lane.b32.xlu0 %v358, 1
    %v1380 = vpop.permute.xlu0 %1379
    %1381 = vrot.lane.b32.xlu0 %v359, 1
    %v1382 = vpop.permute.xlu0 %1381
    %vm1383 = vcmp.lt.s32.totalorder %v371, 1
    %v1384 = vsel %vm1383, %v1380, %v1382
    %v1385 = vsel %vm1383, %v1378, %v1380
    %v1386 = vsel %vm1383, %v1376, %v1378
    %v1387 = vsel %vm1383, %v1382, %v1376
    %s1388 = scalar_lea.vmem [#allocation5], 71
    %v1389 = vld [vmem:[%s1388] ss:$8 sm:$0xf]
    %v1391 = vlaneseq
    %v1392 = vshrl.u32 %v1391, 7
    %v1393 = vsub.s32 0, %v1392
    %v1394 = vrot.slane %v1389, %v1393
    %v1395 = vlaneseq
    %v1396 = vshrl.u32 %v1395, 7
    %v1397 = vsub.s32 1, %v1396
    %v1398 = vrot.slane %v1389, %v1397
    %v1399 = vlaneseq
    %v1400 = vshrl.u32 %v1399, 7
    %v1401 = vsub.s32 2, %v1400
    %v1402 = vrot.slane %v1389, %v1401
    %v1403 = vlaneseq
    %v1404 = vshrl.u32 %v1403, 7
    %v1405 = vsub.s32 3, %v1404
    %v1406 = vrot.slane %v1389, %v1405
    %v1411 = vmul.f32 %v1394, %v1387
    %v1412 = vmul.f32 %v1398, %v1386
    %v1413 = vmul.f32 %v1402, %v1385
    %v1414 = vmul.f32 %v1406, %v1384
    %v1415 = vadd.f32 %v1239, %v1411
    %v1416 = vadd.f32 %v1240, %v1412
    %v1417 = vadd.f32 %v1241, %v1413
    %v1418 = vadd.f32 %v1242, %v1414
    %s1419 = scalar_lea.vmem [#allocation5], 96
    %v1420 = vld [vmem:[%s1419] ss:$8 sm:$0xf]
    %v1422 = vlaneseq
    %v1423 = vshrl.u32 %v1422, 7
    %v1424 = vsub.s32 0, %v1423
    %v1425 = vrot.slane %v1420, %v1424
    %v1426 = vlaneseq
    %v1427 = vshrl.u32 %v1426, 7
    %v1428 = vsub.s32 1, %v1427
    %v1429 = vrot.slane %v1420, %v1428
    %v1430 = vlaneseq
    %v1431 = vshrl.u32 %v1430, 7
    %v1432 = vsub.s32 2, %v1431
    %v1433 = vrot.slane %v1420, %v1432
    %v1434 = vlaneseq
    %v1435 = vshrl.u32 %v1434, 7
    %v1436 = vsub.s32 3, %v1435
    %v1437 = vrot.slane %v1420, %v1436
    %v1442 = vmul.f32 %v1425, %v350
    %v1443 = vmul.f32 %v1429, %v351
    %v1444 = vmul.f32 %v1433, %v358
    %v1445 = vmul.f32 %v1437, %v359
    %v1446 = vadd.f32 %v1283, %v1442
    %v1447 = vadd.f32 %v1284, %v1443
    %v1448 = vadd.f32 %v1285, %v1444
    %v1449 = vadd.f32 %v1286, %v1445
    %1450 = vrot.lane.b32.xlu0 %v350, 127
    %v1451 = vpop.permute.xlu0 %1450
    %1452 = vrot.lane.b32.xlu0 %v351, 127
    %v1453 = vpop.permute.xlu0 %1452
    %1454 = vrot.lane.b32.xlu0 %v358, 127
    %v1455 = vpop.permute.xlu0 %1454
    %1456 = vrot.lane.b32.xlu0 %v359, 127
    %v1457 = vpop.permute.xlu0 %1456
    %vm1458 = vcmp.lt.s32.totalorder %v371, 127
    %v1459 = vsel %vm1458, %v1455, %v1457
    %v1460 = vsel %vm1458, %v1453, %v1455
    %v1461 = vsel %vm1458, %v1451, %v1453
    %v1462 = vsel %vm1458, %v1457, %v1451
    %s1463 = scalar_lea.vmem [#allocation5], 97
    %v1464 = vld [vmem:[%s1463] ss:$8 sm:$0xf]
    %v1466 = vlaneseq
    %v1467 = vshrl.u32 %v1466, 7
    %v1468 = vsub.s32 0, %v1467
    %v1469 = vrot.slane %v1464, %v1468
    %v1470 = vlaneseq
    %v1471 = vshrl.u32 %v1470, 7
    %v1472 = vsub.s32 1, %v1471
    %v1473 = vrot.slane %v1464, %v1472
    %v1474 = vlaneseq
    %v1475 = vshrl.u32 %v1474, 7
    %v1476 = vsub.s32 2, %v1475
    %v1477 = vrot.slane %v1464, %v1476
    %v1478 = vlaneseq
    %v1479 = vshrl.u32 %v1478, 7
    %v1480 = vsub.s32 3, %v1479
    %v1481 = vrot.slane %v1464, %v1480
    %v1486 = vmul.f32 %v1469, %v1461
    %v1487 = vmul.f32 %v1473, %v1460
    %v1488 = vmul.f32 %v1477, %v1459
    %v1489 = vmul.f32 %v1481, %v1462
    %v1490 = vadd.f32 %v1327, %v1486
    %v1491 = vadd.f32 %v1328, %v1487
    %v1492 = vadd.f32 %v1329, %v1488
    %v1493 = vadd.f32 %v1330, %v1489
    %1494 = vrot.lane.b32.xlu0 %v350, 126
    %v1495 = vpop.permute.xlu0 %1494
    %1496 = vrot.lane.b32.xlu0 %v351, 126
    %v1497 = vpop.permute.xlu0 %1496
    %1498 = vrot.lane.b32.xlu0 %v358, 126
    %v1499 = vpop.permute.xlu0 %1498
    %1500 = vrot.lane.b32.xlu0 %v359, 126
    %v1501 = vpop.permute.xlu0 %1500
    %vm1502 = vcmp.lt.s32.totalorder %v371, 126
    %v1503 = vsel %vm1502, %v1499, %v1501
    %v1504 = vsel %vm1502, %v1497, %v1499
    %v1505 = vsel %vm1502, %v1495, %v1497
    %v1506 = vsel %vm1502, %v1501, %v1495
    %s1507 = scalar_lea.vmem [#allocation5], 98
    %v1508 = vld [vmem:[%s1507] ss:$8 sm:$0xf]
    %v1510 = vlaneseq
    %v1511 = vshrl.u32 %v1510, 7
    %v1512 = vsub.s32 0, %v1511
    %v1513 = vrot.slane %v1508, %v1512
    %v1514 = vlaneseq
    %v1515 = vshrl.u32 %v1514, 7
    %v1516 = vsub.s32 1, %v1515
    %v1517 = vrot.slane %v1508, %v1516
    %v1518 = vlaneseq
    %v1519 = vshrl.u32 %v1518, 7
    %v1520 = vsub.s32 2, %v1519
    %v1521 = vrot.slane %v1508, %v1520
    %v1522 = vlaneseq
    %v1523 = vshrl.u32 %v1522, 7
    %v1524 = vsub.s32 3, %v1523
    %v1525 = vrot.slane %v1508, %v1524
    %v1530 = vmul.f32 %v1513, %v1505
    %v1531 = vmul.f32 %v1517, %v1504
    %v1532 = vmul.f32 %v1521, %v1503
    %v1533 = vmul.f32 %v1525, %v1506
    %v1534 = vadd.f32 %v1371, %v1530
    %v1535 = vadd.f32 %v1372, %v1531
    %v1536 = vadd.f32 %v1373, %v1532
    %v1537 = vadd.f32 %v1374, %v1533
    %1538 = vrot.lane.b32.xlu0 %v350, 125
    %v1539 = vpop.permute.xlu0 %1538
    %1540 = vrot.lane.b32.xlu0 %v351, 125
    %v1541 = vpop.permute.xlu0 %1540
    %1542 = vrot.lane.b32.xlu0 %v358, 125
    %v1543 = vpop.permute.xlu0 %1542
    %1544 = vrot.lane.b32.xlu0 %v359, 125
    %v1545 = vpop.permute.xlu0 %1544
    %vm1546 = vcmp.lt.s32.totalorder %v371, 125
    %v1547 = vsel %vm1546, %v1543, %v1545
    %v1548 = vsel %vm1546, %v1541, %v1543
    %v1549 = vsel %vm1546, %v1539, %v1541
    %v1550 = vsel %vm1546, %v1545, %v1539
    %s1551 = scalar_lea.vmem [#allocation5], 99
    %v1552 = vld [vmem:[%s1551] ss:$8 sm:$0xf]
    %v1554 = vlaneseq
    %v1555 = vshrl.u32 %v1554, 7
    %v1556 = vsub.s32 0, %v1555
    %v1557 = vrot.slane %v1552, %v1556
    %v1558 = vlaneseq
    %v1559 = vshrl.u32 %v1558, 7
    %v1560 = vsub.s32 1, %v1559
    %v1561 = vrot.slane %v1552, %v1560
    %v1562 = vlaneseq
    %v1563 = vshrl.u32 %v1562, 7
    %v1564 = vsub.s32 2, %v1563
    %v1565 = vrot.slane %v1552, %v1564
    %v1566 = vlaneseq
    %v1567 = vshrl.u32 %v1566, 7
    %v1568 = vsub.s32 3, %v1567
    %v1569 = vrot.slane %v1552, %v1568
    %v1574 = vmul.f32 %v1557, %v1549
    %v1575 = vmul.f32 %v1561, %v1548
    %v1576 = vmul.f32 %v1565, %v1547
    %v1577 = vmul.f32 %v1569, %v1550
    %v1578 = vadd.f32 %v1415, %v1574
    %v1579 = vadd.f32 %v1416, %v1575
    %v1580 = vadd.f32 %v1417, %v1576
    %v1581 = vadd.f32 %v1418, %v1577
    %1582 = vrot.lane.b32.xlu0 %v350, 115
    %v1583 = vpop.permute.xlu0 %1582
    %1584 = vrot.lane.b32.xlu0 %v351, 115
    %v1585 = vpop.permute.xlu0 %1584
    %1586 = vrot.lane.b32.xlu0 %v358, 115
    %v1587 = vpop.permute.xlu0 %1586
    %1588 = vrot.lane.b32.xlu0 %v359, 115
    %v1589 = vpop.permute.xlu0 %1588
    %vm1590 = vcmp.lt.s32.totalorder %v371, 115
    %v1591 = vsel %vm1590, %v1587, %v1589
    %v1592 = vsel %vm1590, %v1585, %v1587
    %v1593 = vsel %vm1590, %v1583, %v1585
    %v1594 = vsel %vm1590, %v1589, %v1583
    %s1595 = scalar_lea.vmem [#allocation5], 100
    %v1596 = vld [vmem:[%s1595] ss:$8 sm:$0xf]
    %v1598 = vlaneseq
    %v1599 = vshrl.u32 %v1598, 7
    %v1600 = vsub.s32 0, %v1599
    %v1601 = vrot.slane %v1596, %v1600
    %v1602 = vlaneseq
    %v1603 = vshrl.u32 %v1602, 7
    %v1604 = vsub.s32 1, %v1603
    %v1605 = vrot.slane %v1596, %v1604
    %v1606 = vlaneseq
    %v1607 = vshrl.u32 %v1606, 7
    %v1608 = vsub.s32 2, %v1607
    %v1609 = vrot.slane %v1596, %v1608
    %v1610 = vlaneseq
    %v1611 = vshrl.u32 %v1610, 7
    %v1612 = vsub.s32 3, %v1611
    %v1613 = vrot.slane %v1596, %v1612
    %v1618 = vmul.f32 %v1601, %v1593
    %v1619 = vmul.f32 %v1605, %v1592
    %v1620 = vmul.f32 %v1609, %v1591
    %v1621 = vmul.f32 %v1613, %v1594
    %v1622 = vadd.f32 %v1446, %v1618
    %v1623 = vadd.f32 %v1447, %v1619
    %v1624 = vadd.f32 %v1448, %v1620
    %v1625 = vadd.f32 %v1449, %v1621
    %1626 = vrot.lane.b32.xlu0 %v350, 114
    %v1627 = vpop.permute.xlu0 %1626
    %1628 = vrot.lane.b32.xlu0 %v351, 114
    %v1629 = vpop.permute.xlu0 %1628
    %1630 = vrot.lane.b32.xlu0 %v358, 114
    %v1631 = vpop.permute.xlu0 %1630
    %1632 = vrot.lane.b32.xlu0 %v359, 114
    %v1633 = vpop.permute.xlu0 %1632
    %vm1634 = vcmp.lt.s32.totalorder %v371, 114
    %v1635 = vsel %vm1634, %v1631, %v1633
    %v1636 = vsel %vm1634, %v1629, %v1631
    %v1637 = vsel %vm1634, %v1627, %v1629
    %v1638 = vsel %vm1634, %v1633, %v1627
    %s1639 = scalar_lea.vmem [#allocation5], 101
    %v1640 = vld [vmem:[%s1639] ss:$8 sm:$0xf]
    %v1642 = vlaneseq
    %v1643 = vshrl.u32 %v1642, 7
    %v1644 = vsub.s32 0, %v1643
    %v1645 = vrot.slane %v1640, %v1644
    %v1646 = vlaneseq
    %v1647 = vshrl.u32 %v1646, 7
    %v1648 = vsub.s32 1, %v1647
    %v1649 = vrot.slane %v1640, %v1648
    %v1650 = vlaneseq
    %v1651 = vshrl.u32 %v1650, 7
    %v1652 = vsub.s32 2, %v1651
    %v1653 = vrot.slane %v1640, %v1652
    %v1654 = vlaneseq
    %v1655 = vshrl.u32 %v1654, 7
    %v1656 = vsub.s32 3, %v1655
    %v1657 = vrot.slane %v1640, %v1656
    %v1662 = vmul.f32 %v1645, %v1637
    %v1663 = vmul.f32 %v1649, %v1636
    %v1664 = vmul.f32 %v1653, %v1635
    %v1665 = vmul.f32 %v1657, %v1638
    %v1666 = vadd.f32 %v1490, %v1662
    %v1667 = vadd.f32 %v1491, %v1663
    %v1668 = vadd.f32 %v1492, %v1664
    %v1669 = vadd.f32 %v1493, %v1665
    %1670 = vrot.lane.b32.xlu0 %v350, 113
    %v1671 = vpop.permute.xlu0 %1670
    %1672 = vrot.lane.b32.xlu0 %v351, 113
    %v1673 = vpop.permute.xlu0 %1672
    %1674 = vrot.lane.b32.xlu0 %v358, 113
    %v1675 = vpop.permute.xlu0 %1674
    %1676 = vrot.lane.b32.xlu0 %v359, 113
    %v1677 = vpop.permute.xlu0 %1676
    %vm1678 = vcmp.lt.s32.totalorder %v371, 113
    %v1679 = vsel %vm1678, %v1675, %v1677
    %v1680 = vsel %vm1678, %v1673, %v1675
    %v1681 = vsel %vm1678, %v1671, %v1673
    %v1682 = vsel %vm1678, %v1677, %v1671
    %s1683 = scalar_lea.vmem [#allocation5], 102
    %v1684 = vld [vmem:[%s1683] ss:$8 sm:$0xf]
    %v1686 = vlaneseq
    %v1687 = vshrl.u32 %v1686, 7
    %v1688 = vsub.s32 0, %v1687
    %v1689 = vrot.slane %v1684, %v1688
    %v1690 = vlaneseq
    %v1691 = vshrl.u32 %v1690, 7
    %v1692 = vsub.s32 1, %v1691
    %v1693 = vrot.slane %v1684, %v1692
    %v1694 = vlaneseq
    %v1695 = vshrl.u32 %v1694, 7
    %v1696 = vsub.s32 2, %v1695
    %v1697 = vrot.slane %v1684, %v1696
    %v1698 = vlaneseq
    %v1699 = vshrl.u32 %v1698, 7
    %v1700 = vsub.s32 3, %v1699
    %v1701 = vrot.slane %v1684, %v1700
    %v1706 = vmul.f32 %v1689, %v1681
    %v1707 = vmul.f32 %v1693, %v1680
    %v1708 = vmul.f32 %v1697, %v1679
    %v1709 = vmul.f32 %v1701, %v1682
    %v1710 = vadd.f32 %v1534, %v1706
    %v1711 = vadd.f32 %v1535, %v1707
    %v1712 = vadd.f32 %v1536, %v1708
    %v1713 = vadd.f32 %v1537, %v1709
    %1714 = vrot.lane.b32.xlu0 %v350, 112
    %v1715 = vpop.permute.xlu0 %1714
    %1716 = vrot.lane.b32.xlu0 %v351, 112
    %v1717 = vpop.permute.xlu0 %1716
    %1718 = vrot.lane.b32.xlu0 %v358, 112
    %v1719 = vpop.permute.xlu0 %1718
    %1720 = vrot.lane.b32.xlu0 %v359, 112
    %v1721 = vpop.permute.xlu0 %1720
    %vm1722 = vcmp.lt.s32.totalorder %v371, 112
    %v1723 = vsel %vm1722, %v1719, %v1721
    %v1724 = vsel %vm1722, %v1717, %v1719
    %v1725 = vsel %vm1722, %v1715, %v1717
    %v1726 = vsel %vm1722, %v1721, %v1715
    %s1727 = scalar_lea.vmem [#allocation5], 103
    %v1728 = vld [vmem:[%s1727] ss:$8 sm:$0xf]
    %v1730 = vlaneseq
    %v1731 = vshrl.u32 %v1730, 7
    %v1732 = vsub.s32 0, %v1731
    %v1733 = vrot.slane %v1728, %v1732
    %v1734 = vlaneseq
    %v1735 = vshrl.u32 %v1734, 7
    %v1736 = vsub.s32 1, %v1735
    %v1737 = vrot.slane %v1728, %v1736
    %v1738 = vlaneseq
    %v1739 = vshrl.u32 %v1738, 7
    %v1740 = vsub.s32 2, %v1739
    %v1741 = vrot.slane %v1728, %v1740
    %v1742 = vlaneseq
    %v1743 = vshrl.u32 %v1742, 7
    %v1744 = vsub.s32 3, %v1743
    %v1745 = vrot.slane %v1728, %v1744
    %v1750 = vmul.f32 %v1733, %v1725
    %v1751 = vmul.f32 %v1737, %v1724
    %v1752 = vmul.f32 %v1741, %v1723
    %v1753 = vmul.f32 %v1745, %v1726
    %v1754 = vadd.f32 %v1578, %v1750
    %v1755 = vadd.f32 %v1579, %v1751
    %v1756 = vadd.f32 %v1580, %v1752
    %v1757 = vadd.f32 %v1581, %v1753
    %1758 = vrot.lane.b32.xlu0 %v350, 111
    %v1759 = vpop.permute.xlu0 %1758
    %1760 = vrot.lane.b32.xlu0 %v351, 111
    %v1761 = vpop.permute.xlu0 %1760
    %1762 = vrot.lane.b32.xlu0 %v358, 111
    %v1763 = vpop.permute.xlu0 %1762
    %1764 = vrot.lane.b32.xlu0 %v359, 111
    %v1765 = vpop.permute.xlu0 %1764
    %vm1766 = vcmp.lt.s32.totalorder %v371, 111
    %v1767 = vsel %vm1766, %v1763, %v1765
    %v1768 = vsel %vm1766, %v1761, %v1763
    %v1769 = vsel %vm1766, %v1759, %v1761
    %v1770 = vsel %vm1766, %v1765, %v1759
    %s1771 = scalar_lea.vmem [#allocation5], 128
    %v1772 = vld [vmem:[%s1771] ss:$8 sm:$0xf]
    %v1774 = vlaneseq
    %v1775 = vshrl.u32 %v1774, 7
    %v1776 = vsub.s32 0, %v1775
    %v1777 = vrot.slane %v1772, %v1776
    %v1778 = vlaneseq
    %v1779 = vshrl.u32 %v1778, 7
    %v1780 = vsub.s32 1, %v1779
    %v1781 = vrot.slane %v1772, %v1780
    %v1782 = vlaneseq
    %v1783 = vshrl.u32 %v1782, 7
    %v1784 = vsub.s32 2, %v1783
    %v1785 = vrot.slane %v1772, %v1784
    %v1786 = vlaneseq
    %v1787 = vshrl.u32 %v1786, 7
    %v1788 = vsub.s32 3, %v1787
    %v1789 = vrot.slane %v1772, %v1788
    %v1794 = vmul.f32 %v1777, %v1769
    %v1795 = vmul.f32 %v1781, %v1768
    %v1796 = vmul.f32 %v1785, %v1767
    %v1797 = vmul.f32 %v1789, %v1770
    %v1798 = vadd.f32 %v1622, %v1794
    %v1799 = vadd.f32 %v1623, %v1795
    %v1800 = vadd.f32 %v1624, %v1796
    %v1801 = vadd.f32 %v1625, %v1797
    %1802 = vrot.lane.b32.xlu0 %v350, 110
    %v1803 = vpop.permute.xlu0 %1802
    %1804 = vrot.lane.b32.xlu0 %v351, 110
    %v1805 = vpop.permute.xlu0 %1804
    %1806 = vrot.lane.b32.xlu0 %v358, 110
    %v1807 = vpop.permute.xlu0 %1806
    %1808 = vrot.lane.b32.xlu0 %v359, 110
    %v1809 = vpop.permute.xlu0 %1808
    %vm1810 = vcmp.lt.s32.totalorder %v371, 110
    %v1811 = vsel %vm1810, %v1807, %v1809
    %v1812 = vsel %vm1810, %v1805, %v1807
    %v1813 = vsel %vm1810, %v1803, %v1805
    %v1814 = vsel %vm1810, %v1809, %v1803
    %s1815 = scalar_lea.vmem [#allocation5], 129
    %v1816 = vld [vmem:[%s1815] ss:$8 sm:$0xf]
    %v1818 = vlaneseq
    %v1819 = vshrl.u32 %v1818, 7
    %v1820 = vsub.s32 0, %v1819
    %v1821 = vrot.slane %v1816, %v1820
    %v1822 = vlaneseq
    %v1823 = vshrl.u32 %v1822, 7
    %v1824 = vsub.s32 1, %v1823
    %v1825 = vrot.slane %v1816, %v1824
    %v1826 = vlaneseq
    %v1827 = vshrl.u32 %v1826, 7
    %v1828 = vsub.s32 2, %v1827
    %v1829 = vrot.slane %v1816, %v1828
    %v1830 = vlaneseq
    %v1831 = vshrl.u32 %v1830, 7
    %v1832 = vsub.s32 3, %v1831
    %v1833 = vrot.slane %v1816, %v1832
    %v1838 = vmul.f32 %v1821, %v1813
    %v1839 = vmul.f32 %v1825, %v1812
    %v1840 = vmul.f32 %v1829, %v1811
    %v1841 = vmul.f32 %v1833, %v1814
    %v1842 = vadd.f32 %v1666, %v1838
    %v1843 = vadd.f32 %v1667, %v1839
    %v1844 = vadd.f32 %v1668, %v1840
    %v1845 = vadd.f32 %v1669, %v1841
    %1846 = vrot.lane.b32.xlu0 %v350, 109
    %v1847 = vpop.permute.xlu0 %1846
    %1848 = vrot.lane.b32.xlu0 %v351, 109
    %v1849 = vpop.permute.xlu0 %1848
    %1850 = vrot.lane.b32.xlu0 %v358, 109
    %v1851 = vpop.permute.xlu0 %1850
    %1852 = vrot.lane.b32.xlu0 %v359, 109
    %v1853 = vpop.permute.xlu0 %1852
    %vm1854 = vcmp.lt.s32.totalorder %v371, 109
    %v1855 = vsel %vm1854, %v1851, %v1853
    %v1856 = vsel %vm1854, %v1849, %v1851
    %v1857 = vsel %vm1854, %v1847, %v1849
    %v1858 = vsel %vm1854, %v1853, %v1847
    %s1859 = scalar_lea.vmem [#allocation5], 130
    %v1860 = vld [vmem:[%s1859] ss:$8 sm:$0xf]
    %v1862 = vlaneseq
    %v1863 = vshrl.u32 %v1862, 7
    %v1864 = vsub.s32 0, %v1863
    %v1865 = vrot.slane %v1860, %v1864
    %v1866 = vlaneseq
    %v1867 = vshrl.u32 %v1866, 7
    %v1868 = vsub.s32 1, %v1867
    %v1869 = vrot.slane %v1860, %v1868
    %v1870 = vlaneseq
    %v1871 = vshrl.u32 %v1870, 7
    %v1872 = vsub.s32 2, %v1871
    %v1873 = vrot.slane %v1860, %v1872
    %v1874 = vlaneseq
    %v1875 = vshrl.u32 %v1874, 7
    %v1876 = vsub.s32 3, %v1875
    %v1877 = vrot.slane %v1860, %v1876
    %v1882 = vmul.f32 %v1865, %v1857
    %v1883 = vmul.f32 %v1869, %v1856
    %v1884 = vmul.f32 %v1873, %v1855
    %v1885 = vmul.f32 %v1877, %v1858
    %v1886 = vadd.f32 %v1710, %v1882
    %v1887 = vadd.f32 %v1711, %v1883
    %v1888 = vadd.f32 %v1712, %v1884
    %v1889 = vadd.f32 %v1713, %v1885
    %1890 = vrot.lane.b32.xlu0 %v350, 99
    %v1891 = vpop.permute.xlu0 %1890
    %1892 = vrot.lane.b32.xlu0 %v351, 99
    %v1893 = vpop.permute.xlu0 %1892
    %1894 = vrot.lane.b32.xlu0 %v358, 99
    %v1895 = vpop.permute.xlu0 %1894
    %1896 = vrot.lane.b32.xlu0 %v359, 99
    %v1897 = vpop.permute.xlu0 %1896
    %vm1898 = vcmp.lt.s32.totalorder %v371, 99
    %v1899 = vsel %vm1898, %v1895, %v1897
    %v1900 = vsel %vm1898, %v1893, %v1895
    %v1901 = vsel %vm1898, %v1891, %v1893
    %v1902 = vsel %vm1898, %v1897, %v1891
    %s1903 = scalar_lea.vmem [#allocation5], 131
    %v1904 = vld [vmem:[%s1903] ss:$8 sm:$0xf]
    %v1906 = vlaneseq
    %v1907 = vshrl.u32 %v1906, 7
    %v1908 = vsub.s32 0, %v1907
    %v1909 = vrot.slane %v1904, %v1908
    %v1910 = vlaneseq
    %v1911 = vshrl.u32 %v1910, 7
    %v1912 = vsub.s32 1, %v1911
    %v1913 = vrot.slane %v1904, %v1912
    %v1914 = vlaneseq
    %v1915 = vshrl.u32 %v1914, 7
    %v1916 = vsub.s32 2, %v1915
    %v1917 = vrot.slane %v1904, %v1916
    %v1918 = vlaneseq
    %v1919 = vshrl.u32 %v1918, 7
    %v1920 = vsub.s32 3, %v1919
    %v1921 = vrot.slane %v1904, %v1920
    %v1926 = vmul.f32 %v1909, %v1901
    %v1927 = vmul.f32 %v1913, %v1900
    %v1928 = vmul.f32 %v1917, %v1899
    %v1929 = vmul.f32 %v1921, %v1902
    %v1930 = vadd.f32 %v1754, %v1926
    %v1931 = vadd.f32 %v1755, %v1927
    %v1932 = vadd.f32 %v1756, %v1928
    %v1933 = vadd.f32 %v1757, %v1929
    %1934 = vrot.lane.b32.xlu0 %v350, 98
    %v1935 = vpop.permute.xlu0 %1934
    %1936 = vrot.lane.b32.xlu0 %v351, 98
    %v1937 = vpop.permute.xlu0 %1936
    %1938 = vrot.lane.b32.xlu0 %v358, 98
    %v1939 = vpop.permute.xlu0 %1938
    %1940 = vrot.lane.b32.xlu0 %v359, 98
    %v1941 = vpop.permute.xlu0 %1940
    %vm1942 = vcmp.lt.s32.totalorder %v371, 98
    %v1943 = vsel %vm1942, %v1939, %v1941
    %v1944 = vsel %vm1942, %v1937, %v1939
    %v1945 = vsel %vm1942, %v1935, %v1937
    %v1946 = vsel %vm1942, %v1941, %v1935
    %s1947 = scalar_lea.vmem [#allocation5], 132
    %v1948 = vld [vmem:[%s1947] ss:$8 sm:$0xf]
    %v1950 = vlaneseq
    %v1951 = vshrl.u32 %v1950, 7
    %v1952 = vsub.s32 0, %v1951
    %v1953 = vrot.slane %v1948, %v1952
    %v1954 = vlaneseq
    %v1955 = vshrl.u32 %v1954, 7
    %v1956 = vsub.s32 1, %v1955
    %v1957 = vrot.slane %v1948, %v1956
    %v1958 = vlaneseq
    %v1959 = vshrl.u32 %v1958, 7
    %v1960 = vsub.s32 2, %v1959
    %v1961 = vrot.slane %v1948, %v1960
    %v1962 = vlaneseq
    %v1963 = vshrl.u32 %v1962, 7
    %v1964 = vsub.s32 3, %v1963
    %v1965 = vrot.slane %v1948, %v1964
    %v1970 = vmul.f32 %v1953, %v1945
    %v1971 = vmul.f32 %v1957, %v1944
    %v1972 = vmul.f32 %v1961, %v1943
    %v1973 = vmul.f32 %v1965, %v1946
    %v1974 = vadd.f32 %v1798, %v1970
    %v1975 = vadd.f32 %v1799, %v1971
    %v1976 = vadd.f32 %v1800, %v1972
    %v1977 = vadd.f32 %v1801, %v1973
    %1978 = vrot.lane.b32.xlu0 %v350, 97
    %v1979 = vpop.permute.xlu0 %1978
    %1980 = vrot.lane.b32.xlu0 %v351, 97
    %v1981 = vpop.permute.xlu0 %1980
    %1982 = vrot.lane.b32.xlu0 %v358, 97
    %v1983 = vpop.permute.xlu0 %1982
    %1984 = vrot.lane.b32.xlu0 %v359, 97
    %v1985 = vpop.permute.xlu0 %1984
    %vm1986 = vcmp.lt.s32.totalorder %v371, 97
    %v1987 = vsel %vm1986, %v1983, %v1985
    %v1988 = vsel %vm1986, %v1981, %v1983
    %v1989 = vsel %vm1986, %v1979, %v1981
    %v1990 = vsel %vm1986, %v1985, %v1979
    %s1991 = scalar_lea.vmem [#allocation5], 133
    %v1992 = vld [vmem:[%s1991] ss:$8 sm:$0xf]
    %v1994 = vlaneseq
    %v1995 = vshrl.u32 %v1994, 7
    %v1996 = vsub.s32 0, %v1995
    %v1997 = vrot.slane %v1992, %v1996
    %v1998 = vlaneseq
    %v1999 = vshrl.u32 %v1998, 7
    %v2000 = vsub.s32 1, %v1999
    %v2001 = vrot.slane %v1992, %v2000
    %v2002 = vlaneseq
    %v2003 = vshrl.u32 %v2002, 7
    %v2004 = vsub.s32 2, %v2003
    %v2005 = vrot.slane %v1992, %v2004
    %v2006 = vlaneseq
    %v2007 = vshrl.u32 %v2006, 7
    %v2008 = vsub.s32 3, %v2007
    %v2009 = vrot.slane %v1992, %v2008
    %v2014 = vmul.f32 %v1997, %v1989
    %v2015 = vmul.f32 %v2001, %v1988
    %v2016 = vmul.f32 %v2005, %v1987
    %v2017 = vmul.f32 %v2009, %v1990
    %v2018 = vadd.f32 %v1842, %v2014
    %v2019 = vadd.f32 %v1843, %v2015
    %v2020 = vadd.f32 %v1844, %v2016
    %v2021 = vadd.f32 %v1845, %v2017
    %2022 = vrot.lane.b32.xlu0 %v350, 96
    %v2023 = vpop.permute.xlu0 %2022
    %2024 = vrot.lane.b32.xlu0 %v351, 96
    %v2025 = vpop.permute.xlu0 %2024
    %2026 = vrot.lane.b32.xlu0 %v358, 96
    %v2027 = vpop.permute.xlu0 %2026
    %2028 = vrot.lane.b32.xlu0 %v359, 96
    %v2029 = vpop.permute.xlu0 %2028
    %vm2030 = vcmp.lt.s32.totalorder %v371, 96
    %v2031 = vsel %vm2030, %v2027, %v2029
    %v2032 = vsel %vm2030, %v2025, %v2027
    %v2033 = vsel %vm2030, %v2023, %v2025
    %v2034 = vsel %vm2030, %v2029, %v2023
    %s2035 = scalar_lea.vmem [#allocation5], 134
    %v2036 = vld [vmem:[%s2035] ss:$8 sm:$0xf]
    %v2038 = vlaneseq
    %v2039 = vshrl.u32 %v2038, 7
    %v2040 = vsub.s32 0, %v2039
    %v2041 = vrot.slane %v2036, %v2040
    %v2042 = vlaneseq
    %v2043 = vshrl.u32 %v2042, 7
    %v2044 = vsub.s32 1, %v2043
    %v2045 = vrot.slane %v2036, %v2044
    %v2046 = vlaneseq
    %v2047 = vshrl.u32 %v2046, 7
    %v2048 = vsub.s32 2, %v2047
    %v2049 = vrot.slane %v2036, %v2048
    %v2050 = vlaneseq
    %v2051 = vshrl.u32 %v2050, 7
    %v2052 = vsub.s32 3, %v2051
    %v2053 = vrot.slane %v2036, %v2052
    %v2058 = vmul.f32 %v2041, %v2033
    %v2059 = vmul.f32 %v2045, %v2032
    %v2060 = vmul.f32 %v2049, %v2031
    %v2061 = vmul.f32 %v2053, %v2034
    %v2062 = vadd.f32 %v1886, %v2058
    %v2063 = vadd.f32 %v1887, %v2059
    %v2064 = vadd.f32 %v1888, %v2060
    %v2065 = vadd.f32 %v1889, %v2061
    %2066 = vrot.lane.b32.xlu0 %v350, 95
    %v2067 = vpop.permute.xlu0 %2066
    %2068 = vrot.lane.b32.xlu0 %v351, 95
    %v2069 = vpop.permute.xlu0 %2068
    %2070 = vrot.lane.b32.xlu0 %v358, 95
    %v2071 = vpop.permute.xlu0 %2070
    %2072 = vrot.lane.b32.xlu0 %v359, 95
    %v2073 = vpop.permute.xlu0 %2072
    %vm2074 = vcmp.lt.s32.totalorder %v371, 95
    %v2075 = vsel %vm2074, %v2071, %v2073
    %v2076 = vsel %vm2074, %v2069, %v2071
    %v2077 = vsel %vm2074, %v2067, %v2069
    %v2078 = vsel %vm2074, %v2073, %v2067
    %s2079 = scalar_lea.vmem [#allocation5], 135
    %v2080 = vld [vmem:[%s2079] ss:$8 sm:$0xf]
    %v2082 = vlaneseq
    %v2083 = vshrl.u32 %v2082, 7
    %v2084 = vsub.s32 0, %v2083
    %v2085 = vrot.slane %v2080, %v2084
    %v2086 = vlaneseq
    %v2087 = vshrl.u32 %v2086, 7
    %v2088 = vsub.s32 1, %v2087
    %v2089 = vrot.slane %v2080, %v2088
    %v2090 = vlaneseq
    %v2091 = vshrl.u32 %v2090, 7
    %v2092 = vsub.s32 2, %v2091
    %v2093 = vrot.slane %v2080, %v2092
    %v2094 = vlaneseq
    %v2095 = vshrl.u32 %v2094, 7
    %v2096 = vsub.s32 3, %v2095
    %v2097 = vrot.slane %v2080, %v2096
    %v2102 = vmul.f32 %v2085, %v2077
    %v2103 = vmul.f32 %v2089, %v2076
    %v2104 = vmul.f32 %v2093, %v2075
    %v2105 = vmul.f32 %v2097, %v2078
    %v2106 = vadd.f32 %v1930, %v2102
    %v2107 = vadd.f32 %v1931, %v2103
    %v2108 = vadd.f32 %v1932, %v2104
    %v2109 = vadd.f32 %v1933, %v2105
    %2110 = vrot.lane.b32.xlu0 %v350, 94
    %v2111 = vpop.permute.xlu0 %2110
    %2112 = vrot.lane.b32.xlu0 %v351, 94
    %v2113 = vpop.permute.xlu0 %2112
    %2114 = vrot.lane.b32.xlu0 %v358, 94
    %v2115 = vpop.permute.xlu0 %2114
    %2116 = vrot.lane.b32.xlu0 %v359, 94
    %v2117 = vpop.permute.xlu0 %2116
    %vm2118 = vcmp.lt.s32.totalorder %v371, 94
    %v2119 = vsel %vm2118, %v2115, %v2117
    %v2120 = vsel %vm2118, %v2113, %v2115
    %v2121 = vsel %vm2118, %v2111, %v2113
    %v2122 = vsel %vm2118, %v2117, %v2111
    %s2123 = scalar_lea.vmem [#allocation5], 160
    %v2124 = vld [vmem:[%s2123] ss:$8 sm:$0xf]
    %v2126 = vlaneseq
    %v2127 = vshrl.u32 %v2126, 7
    %v2128 = vsub.s32 0, %v2127
    %v2129 = vrot.slane %v2124, %v2128
    %v2130 = vlaneseq
    %v2131 = vshrl.u32 %v2130, 7
    %v2132 = vsub.s32 1, %v2131
    %v2133 = vrot.slane %v2124, %v2132
    %v2134 = vlaneseq
    %v2135 = vshrl.u32 %v2134, 7
    %v2136 = vsub.s32 2, %v2135
    %v2137 = vrot.slane %v2124, %v2136
    %v2138 = vlaneseq
    %v2139 = vshrl.u32 %v2138, 7
    %v2140 = vsub.s32 3, %v2139
    %v2141 = vrot.slane %v2124, %v2140
    %v2146 = vmul.f32 %v2129, %v2121
    %v2147 = vmul.f32 %v2133, %v2120
    %v2148 = vmul.f32 %v2137, %v2119
    %v2149 = vmul.f32 %v2141, %v2122
    %v2150 = vadd.f32 %v1974, %v2146
    %v2151 = vadd.f32 %v1975, %v2147
    %v2152 = vadd.f32 %v1976, %v2148
    %v2153 = vadd.f32 %v1977, %v2149
    %2154 = vrot.lane.b32.xlu0 %v350, 93
    %v2155 = vpop.permute.xlu0 %2154
    %2156 = vrot.lane.b32.xlu0 %v351, 93
    %v2157 = vpop.permute.xlu0 %2156
    %2158 = vrot.lane.b32.xlu0 %v358, 93
    %v2159 = vpop.permute.xlu0 %2158
    %2160 = vrot.lane.b32.xlu0 %v359, 93
    %v2161 = vpop.permute.xlu0 %2160
    %vm2162 = vcmp.lt.s32.totalorder %v371, 93
    %v2163 = vsel %vm2162, %v2159, %v2161
    %v2164 = vsel %vm2162, %v2157, %v2159
    %v2165 = vsel %vm2162, %v2155, %v2157
    %v2166 = vsel %vm2162, %v2161, %v2155
    %s2167 = scalar_lea.vmem [#allocation5], 161
    %v2168 = vld [vmem:[%s2167] ss:$8 sm:$0xf]
    %v2170 = vlaneseq
    %v2171 = vshrl.u32 %v2170, 7
    %v2172 = vsub.s32 0, %v2171
    %v2173 = vrot.slane %v2168, %v2172
    %v2174 = vlaneseq
    %v2175 = vshrl.u32 %v2174, 7
    %v2176 = vsub.s32 1, %v2175
    %v2177 = vrot.slane %v2168, %v2176
    %v2178 = vlaneseq
    %v2179 = vshrl.u32 %v2178, 7
    %v2180 = vsub.s32 2, %v2179
    %v2181 = vrot.slane %v2168, %v2180
    %v2182 = vlaneseq
    %v2183 = vshrl.u32 %v2182, 7
    %v2184 = vsub.s32 3, %v2183
    %v2185 = vrot.slane %v2168, %v2184
    %v2190 = vmul.f32 %v2173, %v2165
    %v2191 = vmul.f32 %v2177, %v2164
    %v2192 = vmul.f32 %v2181, %v2163
    %v2193 = vmul.f32 %v2185, %v2166
    %v2194 = vadd.f32 %v2018, %v2190
    %v2195 = vadd.f32 %v2019, %v2191
    %v2196 = vadd.f32 %v2020, %v2192
    %v2197 = vadd.f32 %v2021, %v2193
    %2198 = vrot.lane.b32.xlu0 %v350, 83
    %v2199 = vpop.permute.xlu0 %2198
    %2200 = vrot.lane.b32.xlu0 %v351, 83
    %v2201 = vpop.permute.xlu0 %2200
    %2202 = vrot.lane.b32.xlu0 %v358, 83
    %v2203 = vpop.permute.xlu0 %2202
    %2204 = vrot.lane.b32.xlu0 %v359, 83
    %v2205 = vpop.permute.xlu0 %2204
    %vm2206 = vcmp.lt.s32.totalorder %v371, 83
    %v2207 = vsel %vm2206, %v2203, %v2205
    %v2208 = vsel %vm2206, %v2201, %v2203
    %v2209 = vsel %vm2206, %v2199, %v2201
    %v2210 = vsel %vm2206, %v2205, %v2199
    %s2211 = scalar_lea.vmem [#allocation5], 162
    %v2212 = vld [vmem:[%s2211] ss:$8 sm:$0xf]
    %v2214 = vlaneseq
    %v2215 = vshrl.u32 %v2214, 7
    %v2216 = vsub.s32 0, %v2215
    %v2217 = vrot.slane %v2212, %v2216
    %v2218 = vlaneseq
    %v2219 = vshrl.u32 %v2218, 7
    %v2220 = vsub.s32 1, %v2219
    %v2221 = vrot.slane %v2212, %v2220
    %v2222 = vlaneseq
    %v2223 = vshrl.u32 %v2222, 7
    %v2224 = vsub.s32 2, %v2223
    %v2225 = vrot.slane %v2212, %v2224
    %v2226 = vlaneseq
    %v2227 = vshrl.u32 %v2226, 7
    %v2228 = vsub.s32 3, %v2227
    %v2229 = vrot.slane %v2212, %v2228
    %v2234 = vmul.f32 %v2217, %v2209
    %v2235 = vmul.f32 %v2221, %v2208
    %v2236 = vmul.f32 %v2225, %v2207
    %v2237 = vmul.f32 %v2229, %v2210
    %v2238 = vadd.f32 %v2062, %v2234
    %v2239 = vadd.f32 %v2063, %v2235
    %v2240 = vadd.f32 %v2064, %v2236
    %v2241 = vadd.f32 %v2065, %v2237
    %2242 = vrot.lane.b32.xlu0 %v350, 82
    %v2243 = vpop.permute.xlu0 %2242
    %2244 = vrot.lane.b32.xlu0 %v351, 82
    %v2245 = vpop.permute.xlu0 %2244
    %2246 = vrot.lane.b32.xlu0 %v358, 82
    %v2247 = vpop.permute.xlu0 %2246
    %2248 = vrot.lane.b32.xlu0 %v359, 82
    %v2249 = vpop.permute.xlu0 %2248
    %vm2250 = vcmp.lt.s32.totalorder %v371, 82
    %v2251 = vsel %vm2250, %v2247, %v2249
    %v2252 = vsel %vm2250, %v2245, %v2247
    %v2253 = vsel %vm2250, %v2243, %v2245
    %v2254 = vsel %vm2250, %v2249, %v2243
    %s2255 = scalar_lea.vmem [#allocation5], 163
    %v2256 = vld [vmem:[%s2255] ss:$8 sm:$0xf]
    %v2258 = vlaneseq
    %v2259 = vshrl.u32 %v2258, 7
    %v2260 = vsub.s32 0, %v2259
    %v2261 = vrot.slane %v2256, %v2260
    %v2262 = vlaneseq
    %v2263 = vshrl.u32 %v2262, 7
    %v2264 = vsub.s32 1, %v2263
    %v2265 = vrot.slane %v2256, %v2264
    %v2266 = vlaneseq
    %v2267 = vshrl.u32 %v2266, 7
    %v2268 = vsub.s32 2, %v2267
    %v2269 = vrot.slane %v2256, %v2268
    %v2270 = vlaneseq
    %v2271 = vshrl.u32 %v2270, 7
    %v2272 = vsub.s32 3, %v2271
    %v2273 = vrot.slane %v2256, %v2272
    %v2278 = vmul.f32 %v2261, %v2253
    %v2279 = vmul.f32 %v2265, %v2252
    %v2280 = vmul.f32 %v2269, %v2251
    %v2281 = vmul.f32 %v2273, %v2254
    %v2282 = vadd.f32 %v2106, %v2278
    %v2283 = vadd.f32 %v2107, %v2279
    %v2284 = vadd.f32 %v2108, %v2280
    %v2285 = vadd.f32 %v2109, %v2281
    %2286 = vrot.lane.b32.xlu0 %v350, 81
    %v2287 = vpop.permute.xlu0 %2286
    %2288 = vrot.lane.b32.xlu0 %v351, 81
    %v2289 = vpop.permute.xlu0 %2288
    %2290 = vrot.lane.b32.xlu0 %v358, 81
    %v2291 = vpop.permute.xlu0 %2290
    %2292 = vrot.lane.b32.xlu0 %v359, 81
    %v2293 = vpop.permute.xlu0 %2292
    %vm2294 = vcmp.lt.s32.totalorder %v371, 81
    %v2295 = vsel %vm2294, %v2291, %v2293
    %v2296 = vsel %vm2294, %v2289, %v2291
    %v2297 = vsel %vm2294, %v2287, %v2289
    %v2298 = vsel %vm2294, %v2293, %v2287
    %s2299 = scalar_lea.vmem [#allocation5], 164
    %v2300 = vld [vmem:[%s2299] ss:$8 sm:$0xf]
    %v2302 = vlaneseq
    %v2303 = vshrl.u32 %v2302, 7
    %v2304 = vsub.s32 0, %v2303
    %v2305 = vrot.slane %v2300, %v2304
    %v2306 = vlaneseq
    %v2307 = vshrl.u32 %v2306, 7
    %v2308 = vsub.s32 1, %v2307
    %v2309 = vrot.slane %v2300, %v2308
    %v2310 = vlaneseq
    %v2311 = vshrl.u32 %v2310, 7
    %v2312 = vsub.s32 2, %v2311
    %v2313 = vrot.slane %v2300, %v2312
    %v2314 = vlaneseq
    %v2315 = vshrl.u32 %v2314, 7
    %v2316 = vsub.s32 3, %v2315
    %v2317 = vrot.slane %v2300, %v2316
    %v2322 = vmul.f32 %v2305, %v2297
    %v2323 = vmul.f32 %v2309, %v2296
    %v2324 = vmul.f32 %v2313, %v2295
    %v2325 = vmul.f32 %v2317, %v2298
    %v2326 = vadd.f32 %v2150, %v2322
    %v2327 = vadd.f32 %v2151, %v2323
    %v2328 = vadd.f32 %v2152, %v2324
    %v2329 = vadd.f32 %v2153, %v2325
    %2330 = vrot.lane.b32.xlu0 %v350, 80
    %v2331 = vpop.permute.xlu0 %2330
    %2332 = vrot.lane.b32.xlu0 %v351, 80
    %v2333 = vpop.permute.xlu0 %2332
    %2334 = vrot.lane.b32.xlu0 %v358, 80
    %v2335 = vpop.permute.xlu0 %2334
    %2336 = vrot.lane.b32.xlu0 %v359, 80
    %v2337 = vpop.permute.xlu0 %2336
    %vm2338 = vcmp.lt.s32.totalorder %v371, 80
    %v2339 = vsel %vm2338, %v2335, %v2337
    %v2340 = vsel %vm2338, %v2333, %v2335
    %v2341 = vsel %vm2338, %v2331, %v2333
    %v2342 = vsel %vm2338, %v2337, %v2331
    %s2343 = scalar_lea.vmem [#allocation5], 165
    %v2344 = vld [vmem:[%s2343] ss:$8 sm:$0xf]
    %v2346 = vlaneseq
    %v2347 = vshrl.u32 %v2346, 7
    %v2348 = vsub.s32 0, %v2347
    %v2349 = vrot.slane %v2344, %v2348
    %v2350 = vlaneseq
    %v2351 = vshrl.u32 %v2350, 7
    %v2352 = vsub.s32 1, %v2351
    %v2353 = vrot.slane %v2344, %v2352
    %v2354 = vlaneseq
    %v2355 = vshrl.u32 %v2354, 7
    %v2356 = vsub.s32 2, %v2355
    %v2357 = vrot.slane %v2344, %v2356
    %v2358 = vlaneseq
    %v2359 = vshrl.u32 %v2358, 7
    %v2360 = vsub.s32 3, %v2359
    %v2361 = vrot.slane %v2344, %v2360
    %v2366 = vmul.f32 %v2349, %v2341
    %v2367 = vmul.f32 %v2353, %v2340
    %v2368 = vmul.f32 %v2357, %v2339
    %v2369 = vmul.f32 %v2361, %v2342
    %v2370 = vadd.f32 %v2194, %v2366
    %v2371 = vadd.f32 %v2195, %v2367
    %v2372 = vadd.f32 %v2196, %v2368
    %v2373 = vadd.f32 %v2197, %v2369
    %2374 = vrot.lane.b32.xlu0 %v350, 79
    %v2375 = vpop.permute.xlu0 %2374
    %2376 = vrot.lane.b32.xlu0 %v351, 79
    %v2377 = vpop.permute.xlu0 %2376
    %2378 = vrot.lane.b32.xlu0 %v358, 79
    %v2379 = vpop.permute.xlu0 %2378
    %2380 = vrot.lane.b32.xlu0 %v359, 79
    %v2381 = vpop.permute.xlu0 %2380
    %vm2382 = vcmp.lt.s32.totalorder %v371, 79
    %v2383 = vsel %vm2382, %v2379, %v2381
    %v2384 = vsel %vm2382, %v2377, %v2379
    %v2385 = vsel %vm2382, %v2375, %v2377
    %v2386 = vsel %vm2382, %v2381, %v2375
    %s2387 = scalar_lea.vmem [#allocation5], 166
    %v2388 = vld [vmem:[%s2387] ss:$8 sm:$0xf]
    %v2390 = vlaneseq
    %v2391 = vshrl.u32 %v2390, 7
    %v2392 = vsub.s32 0, %v2391
    %v2393 = vrot.slane %v2388, %v2392
    %v2394 = vlaneseq
    %v2395 = vshrl.u32 %v2394, 7
    %v2396 = vsub.s32 1, %v2395
    %v2397 = vrot.slane %v2388, %v2396
    %v2398 = vlaneseq
    %v2399 = vshrl.u32 %v2398, 7
    %v2400 = vsub.s32 2, %v2399
    %v2401 = vrot.slane %v2388, %v2400
    %v2402 = vlaneseq
    %v2403 = vshrl.u32 %v2402, 7
    %v2404 = vsub.s32 3, %v2403
    %v2405 = vrot.slane %v2388, %v2404
    %v2410 = vmul.f32 %v2393, %v2385
    %v2411 = vmul.f32 %v2397, %v2384
    %v2412 = vmul.f32 %v2401, %v2383
    %v2413 = vmul.f32 %v2405, %v2386
    %v2414 = vadd.f32 %v2238, %v2410
    %v2415 = vadd.f32 %v2239, %v2411
    %v2416 = vadd.f32 %v2240, %v2412
    %v2417 = vadd.f32 %v2241, %v2413
    %2418 = vrot.lane.b32.xlu0 %v350, 78
    %v2419 = vpop.permute.xlu0 %2418
    %2420 = vrot.lane.b32.xlu0 %v351, 78
    %v2421 = vpop.permute.xlu0 %2420
    %2422 = vrot.lane.b32.xlu0 %v358, 78
    %v2423 = vpop.permute.xlu0 %2422
    %2424 = vrot.lane.b32.xlu0 %v359, 78
    %v2425 = vpop.permute.xlu0 %2424
    %vm2426 = vcmp.lt.s32.totalorder %v371, 78
    %v2427 = vsel %vm2426, %v2423, %v2425
    %v2428 = vsel %vm2426, %v2421, %v2423
    %v2429 = vsel %vm2426, %v2419, %v2421
    %v2430 = vsel %vm2426, %v2425, %v2419
    %s2431 = scalar_lea.vmem [#allocation5], 167
    %v2432 = vld [vmem:[%s2431] ss:$8 sm:$0xf]
    %v2434 = vlaneseq
    %v2435 = vshrl.u32 %v2434, 7
    %v2436 = vsub.s32 0, %v2435
    %v2437 = vrot.slane %v2432, %v2436
    %v2438 = vlaneseq
    %v2439 = vshrl.u32 %v2438, 7
    %v2440 = vsub.s32 1, %v2439
    %v2441 = vrot.slane %v2432, %v2440
    %v2442 = vlaneseq
    %v2443 = vshrl.u32 %v2442, 7
    %v2444 = vsub.s32 2, %v2443
    %v2445 = vrot.slane %v2432, %v2444
    %v2446 = vlaneseq
    %v2447 = vshrl.u32 %v2446, 7
    %v2448 = vsub.s32 3, %v2447
    %v2449 = vrot.slane %v2432, %v2448
    %v2454 = vmul.f32 %v2437, %v2429
    %v2455 = vmul.f32 %v2441, %v2428
    %v2456 = vmul.f32 %v2445, %v2427
    %v2457 = vmul.f32 %v2449, %v2430
    %v2458 = vadd.f32 %v2282, %v2454
    %v2459 = vadd.f32 %v2283, %v2455
    %v2460 = vadd.f32 %v2284, %v2456
    %v2461 = vadd.f32 %v2285, %v2457
    %2462 = vrot.lane.b32.xlu0 %v350, 77
    %v2463 = vpop.permute.xlu0 %2462
    %2464 = vrot.lane.b32.xlu0 %v351, 77
    %v2465 = vpop.permute.xlu0 %2464
    %2466 = vrot.lane.b32.xlu0 %v358, 77
    %v2467 = vpop.permute.xlu0 %2466
    %2468 = vrot.lane.b32.xlu0 %v359, 77
    %v2469 = vpop.permute.xlu0 %2468
    %vm2470 = vcmp.lt.s32.totalorder %v371, 77
    %v2471 = vsel %vm2470, %v2467, %v2469
    %v2472 = vsel %vm2470, %v2465, %v2467
    %v2473 = vsel %vm2470, %v2463, %v2465
    %v2474 = vsel %vm2470, %v2469, %v2463
    %s2475 = scalar_lea.vmem [#allocation5], 192
    %v2476 = vld [vmem:[%s2475] ss:$8 sm:$0xf]
    %v2478 = vlaneseq
    %v2479 = vshrl.u32 %v2478, 7
    %v2480 = vsub.s32 0, %v2479
    %v2481 = vrot.slane %v2476, %v2480
    %v2482 = vlaneseq
    %v2483 = vshrl.u32 %v2482, 7
    %v2484 = vsub.s32 1, %v2483
    %v2485 = vrot.slane %v2476, %v2484
    %v2486 = vlaneseq
    %v2487 = vshrl.u32 %v2486, 7
    %v2488 = vsub.s32 2, %v2487
    %v2489 = vrot.slane %v2476, %v2488
    %v2490 = vlaneseq
    %v2491 = vshrl.u32 %v2490, 7
    %v2492 = vsub.s32 3, %v2491
    %v2493 = vrot.slane %v2476, %v2492
    %v2498 = vmul.f32 %v2481, %v2473
    %v2499 = vmul.f32 %v2485, %v2472
    %v2500 = vmul.f32 %v2489, %v2471
    %v2501 = vmul.f32 %v2493, %v2474
    %v2502 = vadd.f32 %v2326, %v2498
    %v2503 = vadd.f32 %v2327, %v2499
    %v2504 = vadd.f32 %v2328, %v2500
    %v2505 = vadd.f32 %v2329, %v2501
    %v2506 = vadd.f32 %v2502, %v2370
    %v2507 = vadd.f32 %v2503, %v2371
    %v2508 = vadd.f32 %v2504, %v2372
    %v2509 = vadd.f32 %v2505, %v2373
    %v2510 = vadd.f32 %v2414, %v2458
    %v2511 = vadd.f32 %v2415, %v2459
    %v2512 = vadd.f32 %v2416, %v2460
    %v2513 = vadd.f32 %v2417, %v2461
    %v2514 = vadd.f32 %v2506, %v2510
    %v2515 = vadd.f32 %v2507, %v2511
    %v2516 = vadd.f32 %v2508, %v2512
    %v2517 = vadd.f32 %v2509, %v2513
    %v2518 = vadd.f32 %v2514, %v2516
    %v2519 = vadd.f32 %v2515, %v2517
    %v2520 = vxor.u32 %v2518, 2147483648
    %v2521 = vxor.u32 %v2519, 2147483648
    %v2522 = vmul.f32 %v2520, 1.442695
    %v2523 = vpow.pop %v2522
    %v2524 = vmul.f32 %v2521, 1.442695
    %v2525 = vpow.pop %v2524
    %v2526 = vadd.f32 %v2523, 1.0
    %v2527 = vadd.f32 %v2525, 1.0
    %v2528 = vrcp.pop %v2526
    %v2529 = vmul.f32 1.0, %v2528
    %v2530 = vrcp.pop %v2527
    %v2531 = vmul.f32 1.0, %v2530
    %v2534 = vcombine.low %v2529, %v2531
    %v2536 = vunpack.c.l.s4 1966171168
    %v2537 = vunpack.c.0.s8 %v2536
    %v2538 = vlaneseq
    %v2539 = vshrl.u32 %v2538, 7
    %v2540 = vsub.s32 %v2537, %v2539
    %v2541 = vrot.slane %v2534, %v2540
    %v2542 = vcombine.high %v2541, %v2541
    %v2544 = vunpack.c.l.s4 1966171168
    %v2545 = vunpack.c.0.s8 %v2544
    %v2546 = vlaneseq
    %v2547 = vshrl.u32 %v2546, 7
    %v2548 = vsub.s32 %v2545, %v2547
    %v2549 = vrot.slane %v2541, %v2548
    %v2551 = vunpack.c.l.s4 1966171168
    %v2552 = vunpack.c.0.s8 %v2551
    %v2553 = vlaneseq
    %v2554 = vshrl.u32 %v2553, 7
    %v2555 = vsub.s32 %v2552, %v2554
    %v2556 = vrot.slane %v2542, %v2555
    %v2557 = vlaneseq
    %v2558 = vshrl.u32 %v2557, 7
    %v2559 = vsub.s32 0, %v2558
    %v2560 = vrot.slane %v2549, %v2559
    %v2561 = vlaneseq
    %v2562 = vshrl.u32 %v2561, 7
    %v2563 = vsub.s32 1, %v2562
    %v2564 = vrot.slane %v2549, %v2563
    %v2565 = vlaneseq
    %v2566 = vshrl.u32 %v2565, 7
    %v2567 = vsub.s32 0, %v2566
    %v2568 = vrot.slane %v2556, %v2567
    %v2569 = vlaneseq
    %v2570 = vshrl.u32 %v2569, 7
    %v2571 = vsub.s32 1, %v2570
    %v2572 = vrot.slane %v2556, %v2571
    %v2577 = vmul.f32 %v252, %v2560
    %v2578 = vmul.f32 %v253, %v2564
    %v2579 = vmul.f32 %v254, %v2560
    %v2580 = vmul.f32 %v255, %v2564
    %v2581 = vmul.f32 %v256, %v2560
    %v2582 = vmul.f32 %v257, %v2564
    %v2583 = vmul.f32 %v258, %v2560
    %v2584 = vmul.f32 %v259, %v2564
    %v2585 = vmul.f32 %v260, %v2568
    %v2586 = vmul.f32 %v261, %v2572
    %v2587 = vmul.f32 %v262, %v2568
    %v2588 = vmul.f32 %v263, %v2572
    %v2589 = vmul.f32 %v264, %v2568
    %v2590 = vmul.f32 %v265, %v2572
    %v2591 = vmul.f32 %v266, %v2568
    %v2592 = vmul.f32 %v267, %v2572
    %2593 = vst [vmem:[#allocation7] sm:$0xff] %v2577
    %2594 = vst [vmem:[#allocation7 + $0x8] sm:$0xff] %v2578
    %2595 = vst [vmem:[#allocation7 + $0x10] sm:$0xff] %v2579
    %2596 = vst [vmem:[#allocation7 + $0x18] sm:$0xff] %v2580
    %2597 = vst [vmem:[#allocation7 + $0x20] sm:$0xff] %v2581
    %2598 = vst [vmem:[#allocation7 + $0x28] sm:$0xff] %v2582
    %2599 = vst [vmem:[#allocation7 + $0x30] sm:$0xff] %v2583
    %2600 = vst [vmem:[#allocation7 + $0x38] sm:$0xff] %v2584
    %2601 = vst [vmem:[#allocation7 + $0x40] sm:$0xff] %v2585
    %2602 = vst [vmem:[#allocation7 + $0x48] sm:$0xff] %v2586
    %2603 = vst [vmem:[#allocation7 + $0x50] sm:$0xff] %v2587
    %2604 = vst [vmem:[#allocation7 + $0x58] sm:$0xff] %v2588
    %2605 = vst [vmem:[#allocation7 + $0x60] sm:$0xff] %v2589
    %2606 = vst [vmem:[#allocation7 + $0x68] sm:$0xff] %v2590
    %2607 = vst [vmem:[#allocation7 + $0x70] sm:$0xff] %v2591
    %2608 = vst [vmem:[#allocation7 + $0x78] sm:$0xff] %v2592
    // Predicated region
    $region26: #{tpu_custom_call.1} parent=1 // pred_check
      _
    $region27: #{tpu_custom_call.1} parent=1 // pred_check_branch
      %2610 = sbr.rel (0) target = $region29
    $region28: #{tpu_custom_call.1} parent=1 // pred_region
      %s2612 = ssub.s32 2048, 2048
      %2613 = vsyncadd [#allocation4], %s2612
      %s2614 = sshll.u32 [#allocation7], 4
      %s2615 = int_to_ptr.vmem [resolvable:$true] %s2614
      %2620 = dma.vmem_to_hbm [thread:$0]  %s2615, 2048, %s4, [#allocation4], 256, 256, 16
    $region29: #{tpu_custom_call.1} parent=1 // pred_fallthru
      _
    // Predicated region
    $region30: #{tpu_custom_call.1} parent=1 // pred_check
      _
    $region31: #{tpu_custom_call.1} parent=1 // pred_check_branch
      %2622 = sbr.rel (0) target = $region33
    $region32: #{tpu_custom_call.1} parent=1 // pred_region
      %2623 = dma.done [#allocation4], 2048
    $region33: #{tpu_custom_call.1} parent=1 // pred_fallthru
      _
    %2624 = vsyncpa [#allocation3], 1
    %2625 = vsyncpa [#allocation6], 1
    %2626 = vsyncpa [#allocation4], 1

</llo_original>
